<compile_context>
chip_gen: v7x
topology: tpu7x:2x2x1
jax: 0.10.0
libtpu: 0.0.40
codegen_flags: <defaults>
</compile_context>

<pallas_src>
import jax
import jax.numpy as jnp
from jax.experimental import pallas as pl
from jax.experimental.pallas import tpu as pltpu


# ----------------------------------------------------------------------------
# Pallas kernels (all stage outputs lane-dense: last dim = N*H*W rows)
# ----------------------------------------------------------------------------
def conv_lrelu_kernel(w_ref, p_ref, o_ref):
    """o = LeakyReLU_0.2(W @ P).  W:(OC,K) bf16, P:(K,TR) bf16, o:(OC,TR)."""
    y = jnp.dot(w_ref[...], p_ref[...], preferred_element_type=jnp.float32)
    o_ref[...] = jnp.where(y > 0, y, 0.2 * y).astype(o_ref.dtype)


def conv_bn_lrelu_kernel(w_ref, p_ref, g_ref, b_ref, o_ref):
    """o = LeakyReLU_0.2(BN_batchstats(W @ P)) fused in one block.

    W:(OC,K) bf16, P:(K,R) bf16, gamma/beta:(OC,1) f32, o:(OC,R).
    """
    # TODO(synk): for large N*H*W, row-tile this stage and accumulate the
    # per-channel sum/sumsq across tiles (pl.when init/finalize) instead of
    # holding the whole slab in one block.
    y = jnp.dot(w_ref[...], p_ref[...], preferred_element_type=jnp.float32)
    mean = jnp.mean(y, axis=1, keepdims=True)
    var = jnp.maximum(jnp.mean(y * y, axis=1, keepdims=True) - mean * mean, 0.0)
    a = (y - mean) * jax.lax.rsqrt(var + 1e-5)
    a = a * g_ref[...] + b_ref[...]
    o_ref[...] = jnp.where(a > 0, a, 0.2 * a).astype(o_ref.dtype)


def conv_bn_lrelu_sigmoid_head_kernel(w4_ref, p_ref, g_ref, b_ref,
                                      w5_ref, sel_ref, b5_ref, o_ref):
    """conv4 + BN + LReLU + conv5(+bias) + sigmoid fused.

    W4:(OC4,K) bf16, P:(K,N*HW) bf16, gamma/beta:(OC4,1) f32,
    W5:(OC4,N*HW) f32 (conv5 weight tiled per sample),
    sel:(N*HW,N) f32 block-diagonal ones, b5:(1,1) f32, o:(1,N) f32.
    """
    y = jnp.dot(w4_ref[...], p_ref[...], preferred_element_type=jnp.float32)
    mean = jnp.mean(y, axis=1, keepdims=True)
    var = jnp.maximum(jnp.mean(y * y, axis=1, keepdims=True) - mean * mean, 0.0)
    a = (y - mean) * jax.lax.rsqrt(var + 1e-5)
    a = a * g_ref[...] + b_ref[...]
    a = jnp.where(a > 0, a, 0.2 * a)                       # (OC4, N*HW) f32
    # conv5: 4x4 valid conv on a 4x4 map == full weighted reduction per sample.
    partial = jnp.dot(a * w5_ref[...], sel_ref[...],
                      preferred_element_type=jnp.float32)  # (OC4, N)
    logits = jnp.sum(partial, axis=0, keepdims=True) + b5_ref[...]  # (1, N)
    o_ref[...] = 1.0 / (1.0 + jnp.exp(-logits))


# ----------------------------------------------------------------------------
# JAX glue (channel-major im2col; operands pre-cast to bf16 for the MXU)
# ----------------------------------------------------------------------------
def _round_up(v, m):
    return -(-v // m) * m


def _im2col_cfirst(x_cnhw, kh, kw, stride, pad):
    """Patches in (K, rows) layout: K = C*KH*KW, rows = N*OH*OW."""
    # TODO(synk): for large batch, build patch tiles in-kernel from an
    # HBM-resident input (memory_space=pl.ANY + manual DMA / shifted matmuls)
    # instead of materializing the kh*kw-times-larger im2col slab in HBM.
    c, n, h, w = x_cnhw.shape
    xp = jnp.pad(x_cnhw, ((0, 0), (0, 0), (pad, pad), (pad, pad)))
    oh = (h + 2 * pad - kh) // stride + 1
    ow = (w + 2 * pad - kw) // stride + 1
    cols = []
    for i in range(kh):
        for j in range(kw):
            cols.append(
                xp[:, :, i:i + stride * oh:stride, j:j + stride * ow:stride])
    p = jnp.stack(cols, axis=1)                 # (C, KH*KW, N, OH, OW)
    return p.reshape(c * kh * kw, n * oh * ow), oh, ow


def _prep_operands(x_cnhw, w_oihw, stride, pad):
    """im2col + weight flatten, K padded to a multiple of 8, cast to bf16."""
    oc, ic, kh, kw = w_oihw.shape
    p, oh, ow = _im2col_cfirst(x_cnhw, kh, kw, stride, pad)
    k, rows = p.shape
    k8 = _round_up(k, 8)
    w2d = w_oihw.reshape(oc, k)
    if k8 != k:
        p = jnp.pad(p, ((0, k8 - k), (0, 0)))
        w2d = jnp.pad(w2d, ((0, 0), (0, k8 - k)))
    return w2d.astype(jnp.bfloat16), p.astype(jnp.bfloat16), k8, rows, oh, ow


def _pick_row_tile(rows, k8, oc, vmem_budget_bytes=8 << 20):
    """Largest multiple-of-128 row tile dividing `rows` that fits the budget.

    Budget accounts for double-buffered bf16 patch tile + bf16 output tile.
    Falls back to a single full-row block when no aligned divisor exists
    (block == full array is always a legal BlockSpec).
    """
    per_col = k8 * 2 * 2 + oc * 2 * 2          # bytes per row-column of tile
    cap = max(128, (vmem_budget_bytes // per_col) // 128 * 128)
    if rows <= cap:
        return rows
    for t in range(cap, 0, -128):
        if rows % t == 0:
            return t
    return rows


def conv_lrelu_stage(x_cnhw, w_oihw, *, stride, pad, out_dtype=jnp.bfloat16):
    """Conv (bias-free) + LeakyReLU, row-tiled parallel grid."""
    oc = w_oihw.shape[0]
    w2d, p, k8, rows, oh, ow = _prep_operands(x_cnhw, w_oihw, stride, pad)
    tr = _pick_row_tile(rows, k8, oc)
    out = pl.pallas_call(
        conv_lrelu_kernel,
        out_shape=jax.ShapeDtypeStruct((oc, rows), out_dtype),
        grid=(rows // tr,),
        in_specs=[
            pl.BlockSpec((oc, k8), lambda j: (0, 0)),   # weights: grid-invariant
            pl.BlockSpec((k8, tr), lambda j: (0, j)),   # patches: row tile
        ],
        out_specs=pl.BlockSpec((oc, tr), lambda j: (0, j)),
        compiler_params=pltpu.CompilerParams(
            dimension_semantics=("parallel",)),
    )(w2d, p)
    n = x_cnhw.shape[1]
    return out.reshape(oc, n, oh, ow)


def conv_bn_lrelu_stage(x_cnhw, w_oihw, gamma, beta, *, stride, pad,
                        out_dtype=jnp.bfloat16):
    """Conv (bias-free) + BatchNorm(batch stats) + LeakyReLU fused."""
    oc = w_oihw.shape[0]
    w2d, p, k8, rows, oh, ow = _prep_operands(x_cnhw, w_oihw, stride, pad)
    g = gamma.reshape(oc, 1).astype(jnp.float32)
    b = beta.reshape(oc, 1).astype(jnp.float32)
    out = pl.pallas_call(
        conv_bn_lrelu_kernel,
        out_shape=jax.ShapeDtypeStruct((oc, rows), out_dtype),
        grid=(1,),
        in_specs=[
            pl.BlockSpec((oc, k8), lambda i: (0, 0)),
            pl.BlockSpec((k8, rows), lambda i: (0, 0)),
            pl.BlockSpec((oc, 1), lambda i: (0, 0)),
            pl.BlockSpec((oc, 1), lambda i: (0, 0)),
        ],
        out_specs=pl.BlockSpec((oc, rows), lambda i: (0, 0)),
        compiler_params=pltpu.CompilerParams(
            dimension_semantics=("arbitrary",)),
    )(w2d, p, g, b)
    n = x_cnhw.shape[1]
    return out.reshape(oc, n, oh, ow)


def conv_bn_lrelu_sigmoid_head(x_cnhw, w4, g4, b4, w5, b5, *, stride, pad):
    """conv4 + BN + LReLU + conv5(+bias) + sigmoid in a single kernel."""
    oc = w4.shape[0]
    w2d, p, k8, rows, oh, ow = _prep_operands(x_cnhw, w4, stride, pad)
    n = x_cnhw.shape[1]
    hw = oh * ow
    g = g4.reshape(oc, 1).astype(jnp.float32)
    b = b4.reshape(oc, 1).astype(jnp.float32)
    # conv5 weight (1, OC4, 4, 4) -> (OC4, HW), tiled per sample along rows.
    w5flat = w5.reshape(oc, hw).astype(jnp.float32)
    w5big = jnp.tile(w5flat, (1, n))                                  # (OC4, N*HW)
    sel = jnp.kron(jnp.eye(n, dtype=jnp.float32),
                   jnp.ones((hw, 1), jnp.float32))                    # (N*HW, N)
    b5m = b5.reshape(1, 1).astype(jnp.float32)
    out = pl.pallas_call(
        conv_bn_lrelu_sigmoid_head_kernel,
        out_shape=jax.ShapeDtypeStruct((1, n), jnp.float32),
        grid=(1,),
        in_specs=[
            pl.BlockSpec((oc, k8), lambda i: (0, 0)),
            pl.BlockSpec((k8, rows), lambda i: (0, 0)),
            pl.BlockSpec((oc, 1), lambda i: (0, 0)),
            pl.BlockSpec((oc, 1), lambda i: (0, 0)),
            pl.BlockSpec((oc, n * hw), lambda i: (0, 0)),
            pl.BlockSpec((n * hw, n), lambda i: (0, 0)),
            pl.BlockSpec((1, 1), lambda i: (0, 0)),
        ],
        out_specs=pl.BlockSpec((1, n), lambda i: (0, 0)),
        compiler_params=pltpu.CompilerParams(
            dimension_semantics=("arbitrary",)),
    )(w2d, p, g, b, w5big, sel, b5m)
    return out.reshape(-1)                                            # (N,)


# ----------------------------------------------------------------------------
# NetD forward
# ----------------------------------------------------------------------------
def netd_forward(x_nchw, params):
    # NCHW -> CNHW so every stage's activation is (C, N*H*W): channels on the
    # sublane axis, rows on the 128-lane axis (lane-dense stores everywhere).
    x = jnp.transpose(x_nchw, (1, 0, 2, 3))
    # Stage 1: Conv1 + LeakyReLU (row-tiled, parallel grid)
    x = conv_lrelu_stage(x, params["w1"], stride=3, pad=1)
    # Stage 2: Conv2 + BN + LeakyReLU (fused)
    x = conv_bn_lrelu_stage(x, params["w2"], params["g2"], params["b2"],
                            stride=2, pad=1)
    # Stage 3: Conv3 + BN + LeakyReLU (fused)
    x = conv_bn_lrelu_stage(x, params["w3"], params["g3"], params["b3"],
                            stride=2, pad=1)
    # Stage 4: Conv4 + BN + LeakyReLU + Conv5(+bias) + Sigmoid (fused head)
    return conv_bn_lrelu_sigmoid_head(x, params["w4"], params["g4"],
                                      params["b4"], params["w5"], params["b5"],
                                      stride=2, pad=1)


def init_params(key, ndf):
    ks = jax.random.split(key, 8)

    def conv_w(k, oc, ic, kh, kw):
        # Deterministic synthetic init (PyTorch default is kaiming-uniform).
        fan_in = ic * kh * kw
        bound = (1.0 / fan_in) ** 0.5
        return jax.random.uniform(k, (oc, ic, kh, kw), jnp.float32,
                                  -bound, bound)

    return {
        "w1": conv_w(ks[0], ndf, 3, 5, 5),
        "w2": conv_w(ks[1], ndf * 2, ndf, 4, 4),
        "g2": jnp.ones((ndf * 2,), jnp.float32),
        "b2": jnp.zeros((ndf * 2,), jnp.float32),
        "w3": conv_w(ks[2], ndf * 4, ndf * 2, 4, 4),
        "g3": jnp.ones((ndf * 4,), jnp.float32),
        "b3": jnp.zeros((ndf * 4,), jnp.float32),
        "w4": conv_w(ks[3], ndf * 8, ndf * 4, 4, 4),
        "g4": jnp.ones((ndf * 8,), jnp.float32),
        "b4": jnp.zeros((ndf * 8,), jnp.float32),
        "w5": conv_w(ks[4], 1, ndf * 8, 4, 4),
        "b5": jax.random.uniform(ks[5], (1,), jnp.float32, -0.05, 0.05),
    }


if __name__ == "__main__":
    key = jax.random.PRNGKey(0)
    kx, kp = jax.random.split(key)
    ndf = 8
    batch = 2
    # 96x96 input is required so the final 4x4 valid conv lands on a 4x4 map.
    x = jax.random.normal(kx, (batch, 3, 96, 96), jnp.float32)
    params = init_params(kp, ndf)

    fwd = jax.jit(netd_forward)
    out = fwd(x, params)
    jax.block_until_ready(out)

    assert out.shape == (batch,), out.shape
    assert bool(jnp.all((out >= 0.0) & (out <= 1.0)))
    print("KERNEL_OK")
</pallas_src>

<mosaic_0001>
module attributes {stable_mosaic.version = 11 : i64} {
  func.func @conv_lrelu_kernel(%arg0: i32, %arg1: memref<8x80xbf16, #tpu.memory_space<vmem>>, %arg2: memref<80x2048xbf16, #tpu.memory_space<vmem>>, %arg3: memref<8x2048xbf16, #tpu.memory_space<vmem>>) attributes {dimension_semantics = [#tpu.dimension_semantics<parallel>], iteration_bounds = array<i64: 1>, scalar_prefetch = 0 : i64, scratch_operands = 0 : i64, tpu.core_type = #tpu.core_type<tc>, window_params = [{pipeline_mode = #tpu.pipeline_mode<synchronous>, transform_indices = @transform_0, window_bounds = array<i64: 8, 80>}, {transform_indices = @transform_1, window_bounds = array<i64: 80, 2048>}, {transform_indices = @transform_2, window_bounds = array<i64: 8, 2048>}]} {
    %c0 = arith.constant 0 : index
    %c0_0 = arith.constant 0 : index
    %0 = vector.load %arg1[%c0, %c0_0] : memref<8x80xbf16, #tpu.memory_space<vmem>>, vector<8x80xbf16>
    %c0_1 = arith.constant 0 : index
    %c0_2 = arith.constant 0 : index
    %1 = vector.load %arg2[%c0_1, %c0_2] : memref<80x2048xbf16, #tpu.memory_space<vmem>>, vector<80x2048xbf16>
    %cst = arith.constant dense<0.000000e+00> : vector<8x2048xf32>
    %2 = tpu.matmul %0, %1, %cst {dimension_numbers = #tpu.dot_dimension_numbers<[1], [0], [0], [1], [0, 0, 1, 1], [], []>} : vector<8x80xbf16>, vector<80x2048xbf16>, vector<8x2048xf32> -> vector<8x2048xf32>
    %cst_3 = arith.constant 0.000000e+00 : f32
    %3 = vector.broadcast %cst_3 : f32 to vector<8x2048xf32>
    %4 = arith.cmpf ogt, %2, %3 : vector<8x2048xf32>
    %cst_4 = arith.constant 2.000000e-01 : f32
    %5 = vector.broadcast %cst_4 : f32 to vector<8x2048xf32>
    %6 = arith.mulf %5, %2 : vector<8x2048xf32>
    %7 = arith.select %4, %2, %6 : vector<8x2048xi1>, vector<8x2048xf32>
    %8 = arith.truncf %7 : vector<8x2048xf32> to vector<8x2048xbf16>
    %c0_5 = arith.constant 0 : index
    %c0_6 = arith.constant 0 : index
    %9 = vector.load %arg3[%c0_5, %c0_6] : memref<8x2048xbf16, #tpu.memory_space<vmem>>, vector<8x2048xbf16>
    tpu.vector_store %arg3[%c0_5, %c0_6], %8 {strides = array<i32>} : memref<8x2048xbf16, #tpu.memory_space<vmem>>, vector<8x2048xbf16>,
    return
  }
  func.func @transform_0(%arg0: i32) -> (i32, i32) {
    %c0_i32 = arith.constant 0 : i32
    %c0_i32_0 = arith.constant 0 : i32
    %c0_i32_1 = arith.constant 0 : i32
    return %c0_i32, %c0_i32_0 : i32, i32
  }
  func.func @transform_1(%arg0: i32) -> (i32, i32) {
    %c0_i32 = arith.constant 0 : i32
    %c0_i32_0 = arith.constant 0 : i32
    return %c0_i32, %arg0 : i32, i32
  }
  func.func @transform_2(%arg0: i32) -> (i32, i32) {
    %c0_i32 = arith.constant 0 : i32
    %c0_i32_0 = arith.constant 0 : i32
    return %c0_i32, %arg0 : i32, i32
  }
}

module attributes {stable_mosaic.version = 11 : i64} {
  func.func @conv_bn_lrelu_kernel(%arg0: i32, %arg1: memref<16x128xbf16, #tpu.memory_space<vmem>>, %arg2: memref<128x512xbf16, #tpu.memory_space<vmem>>, %arg3: memref<16x1xf32, #tpu.memory_space<vmem>>, %arg4: memref<16x1xf32, #tpu.memory_space<vmem>>, %arg5: memref<16x512xbf16, #tpu.memory_space<vmem>>) attributes {dimension_semantics = [#tpu.dimension_semantics<arbitrary>], iteration_bounds = array<i64: 1>, scalar_prefetch = 0 : i64, scratch_operands = 0 : i64, tpu.core_type = #tpu.core_type<tc>, window_params = [{pipeline_mode = #tpu.pipeline_mode<synchronous>, transform_indices = @transform_0, window_bounds = array<i64: 16, 128>}, {pipeline_mode = #tpu.pipeline_mode<synchronous>, transform_indices = @transform_1, window_bounds = array<i64: 128, 512>}, {pipeline_mode = #tpu.pipeline_mode<synchronous>, transform_indices = @transform_2, window_bounds = array<i64: 16, 1>}, {pipeline_mode = #tpu.pipeline_mode<synchronous>, transform_indices = @transform_3, window_bounds = array<i64: 16, 1>}, {pipeline_mode = #tpu.pipeline_mode<synchronous>, transform_indices = @transform_4, window_bounds = array<i64: 16, 512>}]} {
    %c0 = arith.constant 0 : index
    %c0_0 = arith.constant 0 : index
    %0 = vector.load %arg1[%c0, %c0_0] : memref<16x128xbf16, #tpu.memory_space<vmem>>, vector<16x128xbf16>
    %c0_1 = arith.constant 0 : index
    %c0_2 = arith.constant 0 : index
    %1 = vector.load %arg2[%c0_1, %c0_2] : memref<128x512xbf16, #tpu.memory_space<vmem>>, vector<128x512xbf16>
    %cst = arith.constant dense<0.000000e+00> : vector<16x512xf32>
    %2 = tpu.matmul %0, %1, %cst {dimension_numbers = #tpu.dot_dimension_numbers<[1], [0], [0], [1], [0, 0, 1, 1], [], []>} : vector<16x128xbf16>, vector<128x512xbf16>, vector<16x512xf32> -> vector<16x512xf32>
    %cst_3 = arith.constant dense<0.000000e+00> : vector<16xf32>
    %3 = vector.multi_reduction <add>, %2, %cst_3 [1] : vector<16x512xf32> to vector<16xf32>
    %4 = vector.shape_cast %3 : vector<16xf32> to vector<16x1xf32>
    %cst_4 = arith.constant 5.120000e+02 : f32
    %5 = vector.broadcast %cst_4 : f32 to vector<16x1xf32>
    %6 = arith.divf %4, %5 : vector<16x1xf32>
    %7 = arith.mulf %2, %2 : vector<16x512xf32>
    %cst_5 = arith.constant dense<0.000000e+00> : vector<16xf32>
    %8 = vector.multi_reduction <add>, %7, %cst_5 [1] : vector<16x512xf32> to vector<16xf32>
    %9 = vector.shape_cast %8 : vector<16xf32> to vector<16x1xf32>
    %cst_6 = arith.constant 5.120000e+02 : f32
    %10 = vector.broadcast %cst_6 : f32 to vector<16x1xf32>
    %11 = arith.divf %9, %10 : vector<16x1xf32>
    %12 = arith.mulf %6, %6 : vector<16x1xf32>
    %13 = arith.subf %11, %12 : vector<16x1xf32>
    %cst_7 = arith.constant 0.000000e+00 : f32
    %14 = vector.broadcast %cst_7 : f32 to vector<16x1xf32>
    %15 = arith.maximumf %13, %14 : vector<16x1xf32>
    %16 = vector.broadcast %6 : vector<16x1xf32> to vector<16x512xf32>
    %17 = arith.subf %2, %16 : vector<16x512xf32>
    %cst_8 = arith.constant 9.99999974E-6 : f32
    %18 = vector.broadcast %cst_8 : f32 to vector<16x1xf32>
    %19 = arith.addf %15, %18 : vector<16x1xf32>
    %20 = math.rsqrt %19 : vector<16x1xf32>
    %21 = vector.broadcast %20 : vector<16x1xf32> to vector<16x512xf32>
    %22 = arith.mulf %17, %21 : vector<16x512xf32>
    %c0_9 = arith.constant 0 : index
    %c0_10 = arith.constant 0 : index
    %23 = vector.load %arg3[%c0_9, %c0_10] : memref<16x1xf32, #tpu.memory_space<vmem>>, vector<16x1xf32>
    %24 = vector.broadcast %23 : vector<16x1xf32> to vector<16x512xf32>
    %25 = arith.mulf %22, %24 : vector<16x512xf32>
    %c0_11 = arith.constant 0 : index
    %c0_12 = arith.constant 0 : index
    %26 = vector.load %arg4[%c0_11, %c0_12] : memref<16x1xf32, #tpu.memory_space<vmem>>, vector<16x1xf32>
    %27 = vector.broadcast %26 : vector<16x1xf32> to vector<16x512xf32>
    %28 = arith.addf %25, %27 : vector<16x512xf32>
    %cst_13 = arith.constant 0.000000e+00 : f32
    %29 = vector.broadcast %cst_13 : f32 to vector<16x512xf32>
    %30 = arith.cmpf ogt, %28, %29 : vector<16x512xf32>
    %cst_14 = arith.constant 2.000000e-01 : f32
    %31 = vector.broadcast %cst_14 : f32 to vector<16x512xf32>
    %32 = arith.mulf %31, %28 : vector<16x512xf32>
    %33 = arith.select %30, %28, %32 : vector<16x512xi1>, vector<16x512xf32>
    %34 = arith.truncf %33 : vector<16x512xf32> to vector<16x512xbf16>
    %c0_15 = arith.constant 0 : index
    %c0_16 = arith.constant 0 : index
    %35 = vector.load %arg5[%c0_15, %c0_16] : memref<16x512xbf16, #tpu.memory_space<vmem>>, vector<16x512xbf16>
    tpu.vector_store %arg5[%c0_15, %c0_16], %34 {strides = array<i32>} : memref<16x512xbf16, #tpu.memory_space<vmem>>, vector<16x512xbf16>,
    return
  }
  func.func @transform_0(%arg0: i32) -> (i32, i32) {
    %c0_i32 = arith.constant 0 : i32
    %c0_i32_0 = arith.constant 0 : i32
    %c0_i32_1 = arith.constant 0 : i32
    return %c0_i32, %c0_i32_0 : i32, i32
  }
  func.func @transform_1(%arg0: i32) -> (i32, i32) {
    %c0_i32 = arith.constant 0 : i32
    %c0_i32_0 = arith.constant 0 : i32
    %c0_i32_1 = arith.constant 0 : i32
    return %c0_i32, %c0_i32_0 : i32, i32
  }
  func.func @transform_2(%arg0: i32) -> (i32, i32) {
    %c0_i32 = arith.constant 0 : i32
    %c0_i32_0 = arith.constant 0 : i32
    %c0_i32_1 = arith.constant 0 : i32
    return %c0_i32, %c0_i32_0 : i32, i32
  }
  func.func @transform_3(%arg0: i32) -> (i32, i32) {
    %c0_i32 = arith.constant 0 : i32
    %c0_i32_0 = arith.constant 0 : i32
    %c0_i32_1 = arith.constant 0 : i32
    return %c0_i32, %c0_i32_0 : i32, i32
  }
  func.func @transform_4(%arg0: i32) -> (i32, i32) {
    %c0_i32 = arith.constant 0 : i32
    %c0_i32_0 = arith.constant 0 : i32
    %c0_i32_1 = arith.constant 0 : i32
    return %c0_i32, %c0_i32_0 : i32, i32
  }
}

module attributes {stable_mosaic.version = 11 : i64} {
  func.func @conv_bn_lrelu_kernel(%arg0: i32, %arg1: memref<32x256xbf16, #tpu.memory_space<vmem>>, %arg2: memref<256x128xbf16, #tpu.memory_space<vmem>>, %arg3: memref<32x1xf32, #tpu.memory_space<vmem>>, %arg4: memref<32x1xf32, #tpu.memory_space<vmem>>, %arg5: memref<32x128xbf16, #tpu.memory_space<vmem>>) attributes {dimension_semantics = [#tpu.dimension_semantics<arbitrary>], iteration_bounds = array<i64: 1>, scalar_prefetch = 0 : i64, scratch_operands = 0 : i64, tpu.core_type = #tpu.core_type<tc>, window_params = [{pipeline_mode = #tpu.pipeline_mode<synchronous>, transform_indices = @transform_0, window_bounds = array<i64: 32, 256>}, {pipeline_mode = #tpu.pipeline_mode<synchronous>, transform_indices = @transform_1, window_bounds = array<i64: 256, 128>}, {pipeline_mode = #tpu.pipeline_mode<synchronous>, transform_indices = @transform_2, window_bounds = array<i64: 32, 1>}, {pipeline_mode = #tpu.pipeline_mode<synchronous>, transform_indices = @transform_3, window_bounds = array<i64: 32, 1>}, {pipeline_mode = #tpu.pipeline_mode<synchronous>, transform_indices = @transform_4, window_bounds = array<i64: 32, 128>}]} {
    %c0 = arith.constant 0 : index
    %c0_0 = arith.constant 0 : index
    %0 = vector.load %arg1[%c0, %c0_0] : memref<32x256xbf16, #tpu.memory_space<vmem>>, vector<32x256xbf16>
    %c0_1 = arith.constant 0 : index
    %c0_2 = arith.constant 0 : index
    %1 = vector.load %arg2[%c0_1, %c0_2] : memref<256x128xbf16, #tpu.memory_space<vmem>>, vector<256x128xbf16>
    %cst = arith.constant dense<0.000000e+00> : vector<32x128xf32>
    %2 = tpu.matmul %0, %1, %cst {dimension_numbers = #tpu.dot_dimension_numbers<[1], [0], [0], [1], [0, 0, 1, 1], [], []>} : vector<32x256xbf16>, vector<256x128xbf16>, vector<32x128xf32> -> vector<32x128xf32>
    %cst_3 = arith.constant dense<0.000000e+00> : vector<32xf32>
    %3 = vector.multi_reduction <add>, %2, %cst_3 [1] : vector<32x128xf32> to vector<32xf32>
    %4 = vector.shape_cast %3 : vector<32xf32> to vector<32x1xf32>
    %cst_4 = arith.constant 1.280000e+02 : f32
    %5 = vector.broadcast %cst_4 : f32 to vector<32x1xf32>
    %6 = arith.divf %4, %5 : vector<32x1xf32>
    %7 = arith.mulf %2, %2 : vector<32x128xf32>
    %cst_5 = arith.constant dense<0.000000e+00> : vector<32xf32>
    %8 = vector.multi_reduction <add>, %7, %cst_5 [1] : vector<32x128xf32> to vector<32xf32>
    %9 = vector.shape_cast %8 : vector<32xf32> to vector<32x1xf32>
    %cst_6 = arith.constant 1.280000e+02 : f32
    %10 = vector.broadcast %cst_6 : f32 to vector<32x1xf32>
    %11 = arith.divf %9, %10 : vector<32x1xf32>
    %12 = arith.mulf %6, %6 : vector<32x1xf32>
    %13 = arith.subf %11, %12 : vector<32x1xf32>
    %cst_7 = arith.constant 0.000000e+00 : f32
    %14 = vector.broadcast %cst_7 : f32 to vector<32x1xf32>
    %15 = arith.maximumf %13, %14 : vector<32x1xf32>
    %16 = vector.broadcast %6 : vector<32x1xf32> to vector<32x128xf32>
    %17 = arith.subf %2, %16 : vector<32x128xf32>
    %cst_8 = arith.constant 9.99999974E-6 : f32
    %18 = vector.broadcast %cst_8 : f32 to vector<32x1xf32>
    %19 = arith.addf %15, %18 : vector<32x1xf32>
    %20 = math.rsqrt %19 : vector<32x1xf32>
    %21 = vector.broadcast %20 : vector<32x1xf32> to vector<32x128xf32>
    %22 = arith.mulf %17, %21 : vector<32x128xf32>
    %c0_9 = arith.constant 0 : index
    %c0_10 = arith.constant 0 : index
    %23 = vector.load %arg3[%c0_9, %c0_10] : memref<32x1xf32, #tpu.memory_space<vmem>>, vector<32x1xf32>
    %24 = vector.broadcast %23 : vector<32x1xf32> to vector<32x128xf32>
    %25 = arith.mulf %22, %24 : vector<32x128xf32>
    %c0_11 = arith.constant 0 : index
    %c0_12 = arith.constant 0 : index
    %26 = vector.load %arg4[%c0_11, %c0_12] : memref<32x1xf32, #tpu.memory_space<vmem>>, vector<32x1xf32>
    %27 = vector.broadcast %26 : vector<32x1xf32> to vector<32x128xf32>
    %28 = arith.addf %25, %27 : vector<32x128xf32>
    %cst_13 = arith.constant 0.000000e+00 : f32
    %29 = vector.broadcast %cst_13 : f32 to vector<32x128xf32>
    %30 = arith.cmpf ogt, %28, %29 : vector<32x128xf32>
    %cst_14 = arith.constant 2.000000e-01 : f32
    %31 = vector.broadcast %cst_14 : f32 to vector<32x128xf32>
    %32 = arith.mulf %31, %28 : vector<32x128xf32>
    %33 = arith.select %30, %28, %32 : vector<32x128xi1>, vector<32x128xf32>
    %34 = arith.truncf %33 : vector<32x128xf32> to vector<32x128xbf16>
    %c0_15 = arith.constant 0 : index
    %c0_16 = arith.constant 0 : index
    %35 = vector.load %arg5[%c0_15, %c0_16] : memref<32x128xbf16, #tpu.memory_space<vmem>>, vector<32x128xbf16>
    tpu.vector_store %arg5[%c0_15, %c0_16], %34 {strides = array<i32>} : memref<32x128xbf16, #tpu.memory_space<vmem>>, vector<32x128xbf16>,
    return
  }
  func.func @transform_0(%arg0: i32) -> (i32, i32) {
    %c0_i32 = arith.constant 0 : i32
    %c0_i32_0 = arith.constant 0 : i32
    %c0_i32_1 = arith.constant 0 : i32
    return %c0_i32, %c0_i32_0 : i32, i32
  }
  func.func @transform_1(%arg0: i32) -> (i32, i32) {
    %c0_i32 = arith.constant 0 : i32
    %c0_i32_0 = arith.constant 0 : i32
    %c0_i32_1 = arith.constant 0 : i32
    return %c0_i32, %c0_i32_0 : i32, i32
  }
  func.func @transform_2(%arg0: i32) -> (i32, i32) {
    %c0_i32 = arith.constant 0 : i32
    %c0_i32_0 = arith.constant 0 : i32
    %c0_i32_1 = arith.constant 0 : i32
    return %c0_i32, %c0_i32_0 : i32, i32
  }
  func.func @transform_3(%arg0: i32) -> (i32, i32) {
    %c0_i32 = arith.constant 0 : i32
    %c0_i32_0 = arith.constant 0 : i32
    %c0_i32_1 = arith.constant 0 : i32
    return %c0_i32, %c0_i32_0 : i32, i32
  }
  func.func @transform_4(%arg0: i32) -> (i32, i32) {
    %c0_i32 = arith.constant 0 : i32
    %c0_i32_0 = arith.constant 0 : i32
    %c0_i32_1 = arith.constant 0 : i32
    return %c0_i32, %c0_i32_0 : i32, i32
  }
}

module attributes {stable_mosaic.version = 11 : i64} {
  func.func @conv_bn_lrelu_sigmoid_head_kernel(%arg0: i32, %arg1: memref<64x512xbf16, #tpu.memory_space<vmem>>, %arg2: memref<512x32xbf16, #tpu.memory_space<vmem>>, %arg3: memref<64x1xf32, #tpu.memory_space<vmem>>, %arg4: memref<64x1xf32, #tpu.memory_space<vmem>>, %arg5: memref<64x32xf32, #tpu.memory_space<vmem>>, %arg6: memref<32x2xf32, #tpu.memory_space<vmem>>, %arg7: memref<1x1xf32, #tpu.memory_space<vmem>>, %arg8: memref<1x2xf32, #tpu.memory_space<vmem>>) attributes {dimension_semantics = [#tpu.dimension_semantics<arbitrary>], iteration_bounds = array<i64: 1>, scalar_prefetch = 0 : i64, scratch_operands = 0 : i64, tpu.core_type = #tpu.core_type<tc>, window_params = [{pipeline_mode = #tpu.pipeline_mode<synchronous>, transform_indices = @transform_0, window_bounds = array<i64: 64, 512>}, {pipeline_mode = #tpu.pipeline_mode<synchronous>, transform_indices = @transform_1, window_bounds = array<i64: 512, 32>}, {pipeline_mode = #tpu.pipeline_mode<synchronous>, transform_indices = @transform_2, window_bounds = array<i64: 64, 1>}, {pipeline_mode = #tpu.pipeline_mode<synchronous>, transform_indices = @transform_3, window_bounds = array<i64: 64, 1>}, {pipeline_mode = #tpu.pipeline_mode<synchronous>, transform_indices = @transform_4, window_bounds = array<i64: 64, 32>}, {pipeline_mode = #tpu.pipeline_mode<synchronous>, transform_indices = @transform_5, window_bounds = array<i64: 32, 2>}, {pipeline_mode = #tpu.pipeline_mode<synchronous>, transform_indices = @transform_6, window_bounds = array<i64: 1, 1>}, {pipeline_mode = #tpu.pipeline_mode<synchronous>, transform_indices = @transform_7, window_bounds = array<i64: 1, 2>}]} {
    %c0 = arith.constant 0 : index
    %c0_0 = arith.constant 0 : index
    %0 = vector.load %arg1[%c0, %c0_0] : memref<64x512xbf16, #tpu.memory_space<vmem>>, vector<64x512xbf16>
    %c0_1 = arith.constant 0 : index
    %c0_2 = arith.constant 0 : index
    %1 = vector.load %arg2[%c0_1, %c0_2] : memref<512x32xbf16, #tpu.memory_space<vmem>>, vector<512x32xbf16>
    %cst = arith.constant dense<0.000000e+00> : vector<64x32xf32>
    %2 = tpu.matmul %0, %1, %cst {dimension_numbers = #tpu.dot_dimension_numbers<[1], [0], [0], [1], [0, 0, 1, 1], [], []>} : vector<64x512xbf16>, vector<512x32xbf16>, vector<64x32xf32> -> vector<64x32xf32>
    %cst_3 = arith.constant dense<0.000000e+00> : vector<64xf32>
    %3 = vector.multi_reduction <add>, %2, %cst_3 [1] : vector<64x32xf32> to vector<64xf32>
    %4 = vector.shape_cast %3 : vector<64xf32> to vector<64x1xf32>
    %cst_4 = arith.constant 3.200000e+01 : f32
    %5 = vector.broadcast %cst_4 : f32 to vector<64x1xf32>
    %6 = arith.divf %4, %5 : vector<64x1xf32>
    %7 = arith.mulf %2, %2 : vector<64x32xf32>
    %cst_5 = arith.constant dense<0.000000e+00> : vector<64xf32>
    %8 = vector.multi_reduction <add>, %7, %cst_5 [1] : vector<64x32xf32> to vector<64xf32>
    %9 = vector.shape_cast %8 : vector<64xf32> to vector<64x1xf32>
    %cst_6 = arith.constant 3.200000e+01 : f32
    %10 = vector.broadcast %cst_6 : f32 to vector<64x1xf32>
    %11 = arith.divf %9, %10 : vector<64x1xf32>
    %12 = arith.mulf %6, %6 : vector<64x1xf32>
    %13 = arith.subf %11, %12 : vector<64x1xf32>
    %cst_7 = arith.constant 0.000000e+00 : f32
    %14 = vector.broadcast %cst_7 : f32 to vector<64x1xf32>
    %15 = arith.maximumf %13, %14 : vector<64x1xf32>
    %16 = vector.broadcast %6 : vector<64x1xf32> to vector<64x32xf32>
    %17 = arith.subf %2, %16 : vector<64x32xf32>
    %cst_8 = arith.constant 9.99999974E-6 : f32
    %18 = vector.broadcast %cst_8 : f32 to vector<64x1xf32>
    %19 = arith.addf %15, %18 : vector<64x1xf32>
    %20 = math.rsqrt %19 : vector<64x1xf32>
    %21 = vector.broadcast %20 : vector<64x1xf32> to vector<64x32xf32>
    %22 = arith.mulf %17, %21 : vector<64x32xf32>
    %c0_9 = arith.constant 0 : index
    %c0_10 = arith.constant 0 : index
    %23 = vector.load %arg3[%c0_9, %c0_10] : memref<64x1xf32, #tpu.memory_space<vmem>>, vector<64x1xf32>
    %24 = vector.broadcast %23 : vector<64x1xf32> to vector<64x32xf32>
    %25 = arith.mulf %22, %24 : vector<64x32xf32>
    %c0_11 = arith.constant 0 : index
    %c0_12 = arith.constant 0 : index
    %26 = vector.load %arg4[%c0_11, %c0_12] : memref<64x1xf32, #tpu.memory_space<vmem>>, vector<64x1xf32>
    %27 = vector.broadcast %26 : vector<64x1xf32> to vector<64x32xf32>
    %28 = arith.addf %25, %27 : vector<64x32xf32>
    %cst_13 = arith.constant 0.000000e+00 : f32
    %29 = vector.broadcast %cst_13 : f32 to vector<64x32xf32>
    %30 = arith.cmpf ogt, %28, %29 : vector<64x32xf32>
    %cst_14 = arith.constant 2.000000e-01 : f32
    %31 = vector.broadcast %cst_14 : f32 to vector<64x32xf32>
    %32 = arith.mulf %31, %28 : vector<64x32xf32>
    %33 = arith.select %30, %28, %32 : vector<64x32xi1>, vector<64x32xf32>
    %c0_15 = arith.constant 0 : index
    %c0_16 = arith.constant 0 : index
    %34 = vector.load %arg5[%c0_15, %c0_16] : memref<64x32xf32, #tpu.memory_space<vmem>>, vector<64x32xf32>
    %35 = arith.mulf %33, %34 : vector<64x32xf32>
    %c0_17 = arith.constant 0 : index
    %c0_18 = arith.constant 0 : index
    %36 = vector.load %arg6[%c0_17, %c0_18] : memref<32x2xf32, #tpu.memory_space<vmem>>, vector<32x2xf32>
    %cst_19 = arith.constant dense<0.000000e+00> : vector<64x2xf32>
    %37 = tpu.matmul %35, %36, %cst_19 {dimension_numbers = #tpu.dot_dimension_numbers<[1], [0], [0], [1], [0, 0, 1, 1], [], []>} : vector<64x32xf32>, vector<32x2xf32>, vector<64x2xf32> -> vector<64x2xf32>
    %cst_20 = arith.constant dense<0.000000e+00> : vector<2xf32>
    %38 = vector.multi_reduction <add>, %37, %cst_20 [0] : vector<64x2xf32> to vector<2xf32>
    %39 = vector.shape_cast %38 : vector<2xf32> to vector<1x2xf32>
    %c0_21 = arith.constant 0 : index
    %c0_22 = arith.constant 0 : index
    %40 = vector.load %arg7[%c0_21, %c0_22] : memref<1x1xf32, #tpu.memory_space<vmem>>, vector<1x1xf32>
    %41 = vector.broadcast %40 : vector<1x1xf32> to vector<1x2xf32>
    %42 = arith.addf %39, %41 : vector<1x2xf32>
    %cst_23 = arith.constant 0.000000e+00 : f32
    %43 = vector.broadcast %cst_23 : f32 to vector<1x2xf32>
    %44 = arith.subf %43, %42 : vector<1x2xf32>
    %45 = math.exp %44 : vector<1x2xf32>
    %cst_24 = arith.constant 1.000000e+00 : f32
    %46 = vector.broadcast %cst_24 : f32 to vector<1x2xf32>
    %47 = arith.addf %46, %45 : vector<1x2xf32>
    %cst_25 = arith.constant 1.000000e+00 : f32
    %48 = vector.broadcast %cst_25 : f32 to vector<1x2xf32>
    %49 = arith.divf %48, %47 : vector<1x2xf32>
    %c0_26 = arith.constant 0 : index
    %c0_27 = arith.constant 0 : index
    %50 = vector.load %arg8[%c0_26, %c0_27] : memref<1x2xf32, #tpu.memory_space<vmem>>, vector<1x2xf32>
    tpu.vector_store %arg8[%c0_26, %c0_27], %49 {strides = array<i32>} : memref<1x2xf32, #tpu.memory_space<vmem>>, vector<1x2xf32>,
    return
  }
  func.func @transform_0(%arg0: i32) -> (i32, i32) {
    %c0_i32 = arith.constant 0 : i32
    %c0_i32_0 = arith.constant 0 : i32
    %c0_i32_1 = arith.constant 0 : i32
    return %c0_i32, %c0_i32_0 : i32, i32
  }
  func.func @transform_1(%arg0: i32) -> (i32, i32) {
    %c0_i32 = arith.constant 0 : i32
    %c0_i32_0 = arith.constant 0 : i32
    %c0_i32_1 = arith.constant 0 : i32
    return %c0_i32, %c0_i32_0 : i32, i32
  }
  func.func @transform_2(%arg0: i32) -> (i32, i32) {
    %c0_i32 = arith.constant 0 : i32
    %c0_i32_0 = arith.constant 0 : i32
    %c0_i32_1 = arith.constant 0 : i32
    return %c0_i32, %c0_i32_0 : i32, i32
  }
  func.func @transform_3(%arg0: i32) -> (i32, i32) {
    %c0_i32 = arith.constant 0 : i32
    %c0_i32_0 = arith.constant 0 : i32
    %c0_i32_1 = arith.constant 0 : i32
    return %c0_i32, %c0_i32_0 : i32, i32
  }
  func.func @transform_4(%arg0: i32) -> (i32, i32) {
    %c0_i32 = arith.constant 0 : i32
    %c0_i32_0 = arith.constant 0 : i32
    %c0_i32_1 = arith.constant 0 : i32
    return %c0_i32, %c0_i32_0 : i32, i32
  }
  func.func @transform_5(%arg0: i32) -> (i32, i32) {
    %c0_i32 = arith.constant 0 : i32
    %c0_i32_0 = arith.constant 0 : i32
    %c0_i32_1 = arith.constant 0 : i32
    return %c0_i32, %c0_i32_0 : i32, i32
  }
  func.func @transform_6(%arg0: i32) -> (i32, i32) {
    %c0_i32 = arith.constant 0 : i32
    %c0_i32_0 = arith.constant 0 : i32
    %c0_i32_1 = arith.constant 0 : i32
    return %c0_i32, %c0_i32_0 : i32, i32
  }
  func.func @transform_7(%arg0: i32) -> (i32, i32) {
    %c0_i32 = arith.constant 0 : i32
    %c0_i32_0 = arith.constant 0 : i32
    %c0_i32_1 = arith.constant 0 : i32
    return %c0_i32, %c0_i32_0 : i32, i32
  }
}

</mosaic_0001>

<llo_original>
// kernel: netd_forward.4
$region0: #{netd_forward.4}
  #allocation0 [shape = 'u32[]', space=smem, size = 0x4, offset = 0x4, fixed_abs, tag = 'smem constant byte address 0x4 - core index']
  #allocation1 [shape = 'u32[144,128]{1,0:T(1,128)}', space=vmem, size = 0x12000, scoped, tag = 'internal scratch']
  %s0 = inlined_call_operand.vmem [shape: bf16[8,80], index: 0, kind: input, shape index: {}]
  %s1 = inlined_call_operand.vmem [shape: bf16[80,2048], index: 1, kind: input, shape index: {}]
  %s2 = inlined_call_operand.vmem [shape: bf16[8,2048], index: 2, kind: output, shape index: {}]
  %s3 = sld [smem:[#allocation0]]
  $region18: #{netd_forward.4} parent=0
    _
  %s5 = ssub.s32 1, %s3
  %s6 = scalar_select 0, %s5, %s3
  // Predicated region
  $region2: #{netd_forward.4} parent=0 // pred_check
    _
  $region3: #{netd_forward.4} parent=0 // pred_check_branch
    %8 = sbr.rel (0) target = $region5
  $region4: #{netd_forward.4} parent=0 // pred_region
    _
  $region5: #{netd_forward.4} parent=0 // pred_fallthru
    _
  // Predicated region
  $region6: #{netd_forward.4} parent=0 // pred_check
    _
  $region7: #{netd_forward.4} parent=0 // pred_check_branch
    %10 = sbr.rel (0) target = $region9
  $region8: #{netd_forward.4} parent=0 // pred_region
    _
  $region9: #{netd_forward.4} parent=0 // pred_fallthru
    _
  %v12 = vld [vmem:[%s0] sm:$0xf]
  %v13 = vld [vmem:[%s1] sm:$0xff]
  %v14 = vld [vmem:[%s1 + $0x8] sm:$0xff]
  %v15 = vld [vmem:[%s1 + $0x10] sm:$0xff]
  %v16 = vld [vmem:[%s1 + $0x18] sm:$0xff]
  %v17 = vld [vmem:[%s1 + $0x20] sm:$0xff]
  %v18 = vld [vmem:[%s1 + $0x28] sm:$0xff]
  %v19 = vld [vmem:[%s1 + $0x30] sm:$0xff]
  %v20 = vld [vmem:[%s1 + $0x38] sm:$0xff]
  %v21 = vld [vmem:[%s1 + $0x40] sm:$0xff]
  %v22 = vld [vmem:[%s1 + $0x48] sm:$0xff]
  %v23 = vld [vmem:[%s1 + $0x50] sm:$0xff]
  %v24 = vld [vmem:[%s1 + $0x58] sm:$0xff]
  %v25 = vld [vmem:[%s1 + $0x60] sm:$0xff]
  %v26 = vld [vmem:[%s1 + $0x68] sm:$0xff]
  %v27 = vld [vmem:[%s1 + $0x70] sm:$0xff]
  %v28 = vld [vmem:[%s1 + $0x78] sm:$0xff]
  %v29 = vld [vmem:[%s1 + $0x80] sm:$0xff]
  %v30 = vld [vmem:[%s1 + $0x88] sm:$0xff]
  %v31 = vld [vmem:[%s1 + $0x90] sm:$0xff]
  %v32 = vld [vmem:[%s1 + $0x98] sm:$0xff]
  %v33 = vld [vmem:[%s1 + $0xa0] sm:$0xff]
  %v34 = vld [vmem:[%s1 + $0xa8] sm:$0xff]
  %v35 = vld [vmem:[%s1 + $0xb0] sm:$0xff]
  %v36 = vld [vmem:[%s1 + $0xb8] sm:$0xff]
  %v37 = vld [vmem:[%s1 + $0xc0] sm:$0xff]
  %v38 = vld [vmem:[%s1 + $0xc8] sm:$0xff]
  %v39 = vld [vmem:[%s1 + $0xd0] sm:$0xff]
  %v40 = vld [vmem:[%s1 + $0xd8] sm:$0xff]
  %v41 = vld [vmem:[%s1 + $0xe0] sm:$0xff]
  %v42 = vld [vmem:[%s1 + $0xe8] sm:$0xff]
  %v43 = vld [vmem:[%s1 + $0xf0] sm:$0xff]
  %v44 = vld [vmem:[%s1 + $0xf8] sm:$0xff]
  %v45 = vld [vmem:[%s1 + $0x100] sm:$0xff]
  %v46 = vld [vmem:[%s1 + $0x108] sm:$0xff]
  %v47 = vld [vmem:[%s1 + $0x110] sm:$0xff]
  %v48 = vld [vmem:[%s1 + $0x118] sm:$0xff]
  %v49 = vld [vmem:[%s1 + $0x120] sm:$0xff]
  %v50 = vld [vmem:[%s1 + $0x128] sm:$0xff]
  %v51 = vld [vmem:[%s1 + $0x130] sm:$0xff]
  %v52 = vld [vmem:[%s1 + $0x138] sm:$0xff]
  %v53 = vld [vmem:[%s1 + $0x140] sm:$0xff]
  %v54 = vld [vmem:[%s1 + $0x148] sm:$0xff]
  %v55 = vld [vmem:[%s1 + $0x150] sm:$0xff]
  %v56 = vld [vmem:[%s1 + $0x158] sm:$0xff]
  %v57 = vld [vmem:[%s1 + $0x160] sm:$0xff]
  %v58 = vld [vmem:[%s1 + $0x168] sm:$0xff]
  %v59 = vld [vmem:[%s1 + $0x170] sm:$0xff]
  %v60 = vld [vmem:[%s1 + $0x178] sm:$0xff]
  %v61 = vld [vmem:[%s1 + $0x180] sm:$0xff]
  %v62 = vld [vmem:[%s1 + $0x188] sm:$0xff]
  %v63 = vld [vmem:[%s1 + $0x190] sm:$0xff]
  %v64 = vld [vmem:[%s1 + $0x198] sm:$0xff]
  %v65 = vld [vmem:[%s1 + $0x1a0] sm:$0xff]
  %v66 = vld [vmem:[%s1 + $0x1a8] sm:$0xff]
  %v67 = vld [vmem:[%s1 + $0x1b0] sm:$0xff]
  %v68 = vld [vmem:[%s1 + $0x1b8] sm:$0xff]
  %v69 = vld [vmem:[%s1 + $0x1c0] sm:$0xff]
  %v70 = vld [vmem:[%s1 + $0x1c8] sm:$0xff]
  %v71 = vld [vmem:[%s1 + $0x1d0] sm:$0xff]
  %v72 = vld [vmem:[%s1 + $0x1d8] sm:$0xff]
  %v73 = vld [vmem:[%s1 + $0x1e0] sm:$0xff]
  %v74 = vld [vmem:[%s1 + $0x1e8] sm:$0xff]
  %v75 = vld [vmem:[%s1 + $0x1f0] sm:$0xff]
  %v76 = vld [vmem:[%s1 + $0x1f8] sm:$0xff]
  %v77 = vld [vmem:[%s1 + $0x200] sm:$0xff]
  %v78 = vld [vmem:[%s1 + $0x208] sm:$0xff]
  %v79 = vld [vmem:[%s1 + $0x210] sm:$0xff]
  %v80 = vld [vmem:[%s1 + $0x218] sm:$0xff]
  %v81 = vld [vmem:[%s1 + $0x220] sm:$0xff]
  %v82 = vld [vmem:[%s1 + $0x228] sm:$0xff]
  %v83 = vld [vmem:[%s1 + $0x230] sm:$0xff]
  %v84 = vld [vmem:[%s1 + $0x238] sm:$0xff]
  %v85 = vld [vmem:[%s1 + $0x240] sm:$0xff]
  %v86 = vld [vmem:[%s1 + $0x248] sm:$0xff]
  %v87 = vld [vmem:[%s1 + $0x250] sm:$0xff]
  %v88 = vld [vmem:[%s1 + $0x258] sm:$0xff]
  %v89 = vld [vmem:[%s1 + $0x260] sm:$0xff]
  %v90 = vld [vmem:[%s1 + $0x268] sm:$0xff]
  %v91 = vld [vmem:[%s1 + $0x270] sm:$0xff]
  %v92 = vld [vmem:[%s1 + $0x278] sm:$0xff]
  %v173 = vunpack.c.l.b16 %v13
  %v174 = vunpack.c.h.b16 %v13
  %v175 = vunpack.c.l.b16 %v14
  %v176 = vunpack.c.h.b16 %v14
  %v177 = vunpack.c.l.b16 %v15
  %v178 = vunpack.c.h.b16 %v15
  %v179 = vunpack.c.l.b16 %v16
  %v180 = vunpack.c.h.b16 %v16
  %v181 = vunpack.c.l.b16 %v17
  %v182 = vunpack.c.h.b16 %v17
  %v183 = vunpack.c.l.b16 %v18
  %v184 = vunpack.c.h.b16 %v18
  %v185 = vunpack.c.l.b16 %v19
  %v186 = vunpack.c.h.b16 %v19
  %v187 = vunpack.c.l.b16 %v20
  %v188 = vunpack.c.h.b16 %v20
  %v189 = vunpack.c.l.b16 %v21
  %v190 = vunpack.c.h.b16 %v21
  %v191 = vunpack.c.l.b16 %v22
  %v192 = vunpack.c.h.b16 %v22
  %v193 = vunpack.c.l.b16 %v23
  %v194 = vunpack.c.h.b16 %v23
  %v195 = vunpack.c.l.b16 %v24
  %v196 = vunpack.c.h.b16 %v24
  %v197 = vunpack.c.l.b16 %v25
  %v198 = vunpack.c.h.b16 %v25
  %v199 = vunpack.c.l.b16 %v26
  %v200 = vunpack.c.h.b16 %v26
  %v201 = vunpack.c.l.b16 %v27
  %v202 = vunpack.c.h.b16 %v27
  %v203 = vunpack.c.l.b16 %v28
  %v204 = vunpack.c.h.b16 %v28
  %v205 = vunpack.c.l.b16 %v29
  %v206 = vunpack.c.h.b16 %v29
  %v207 = vunpack.c.l.b16 %v30
  %v208 = vunpack.c.h.b16 %v30
  %v209 = vunpack.c.l.b16 %v31
  %v210 = vunpack.c.h.b16 %v31
  %v211 = vunpack.c.l.b16 %v32
  %v212 = vunpack.c.h.b16 %v32
  %v213 = vunpack.c.l.b16 %v33
  %v214 = vunpack.c.h.b16 %v33
  %v215 = vunpack.c.l.b16 %v34
  %v216 = vunpack.c.h.b16 %v34
  %v217 = vunpack.c.l.b16 %v35
  %v218 = vunpack.c.h.b16 %v35
  %v219 = vunpack.c.l.b16 %v36
  %v220 = vunpack.c.h.b16 %v36
  %v221 = vunpack.c.l.b16 %v37
  %v222 = vunpack.c.h.b16 %v37
  %v223 = vunpack.c.l.b16 %v38
  %v224 = vunpack.c.h.b16 %v38
  %v225 = vunpack.c.l.b16 %v39
  %v226 = vunpack.c.h.b16 %v39
  %v227 = vunpack.c.l.b16 %v40
  %v228 = vunpack.c.h.b16 %v40
  %v229 = vunpack.c.l.b16 %v41
  %v230 = vunpack.c.h.b16 %v41
  %v231 = vunpack.c.l.b16 %v42
  %v232 = vunpack.c.h.b16 %v42
  %v233 = vunpack.c.l.b16 %v43
  %v234 = vunpack.c.h.b16 %v43
  %v235 = vunpack.c.l.b16 %v44
  %v236 = vunpack.c.h.b16 %v44
  %v237 = vunpack.c.l.b16 %v45
  %v238 = vunpack.c.h.b16 %v45
  %v239 = vunpack.c.l.b16 %v46
  %v240 = vunpack.c.h.b16 %v46
  %v241 = vunpack.c.l.b16 %v47
  %v242 = vunpack.c.h.b16 %v47
  %v243 = vunpack.c.l.b16 %v48
  %v244 = vunpack.c.h.b16 %v48
  %v245 = vunpack.c.l.b16 %v49
  %v246 = vunpack.c.h.b16 %v49
  %v247 = vunpack.c.l.b16 %v50
  %v248 = vunpack.c.h.b16 %v50
  %v249 = vunpack.c.l.b16 %v51
  %v250 = vunpack.c.h.b16 %v51
  %v251 = vunpack.c.l.b16 %v52
  %v252 = vunpack.c.h.b16 %v52
  %v253 = vunpack.c.l.b16 %v53
  %v254 = vunpack.c.h.b16 %v53
  %v255 = vunpack.c.l.b16 %v54
  %v256 = vunpack.c.h.b16 %v54
  %v257 = vunpack.c.l.b16 %v55
  %v258 = vunpack.c.h.b16 %v55
  %v259 = vunpack.c.l.b16 %v56
  %v260 = vunpack.c.h.b16 %v56
  %v261 = vunpack.c.l.b16 %v57
  %v262 = vunpack.c.h.b16 %v57
  %v263 = vunpack.c.l.b16 %v58
  %v264 = vunpack.c.h.b16 %v58
  %v265 = vunpack.c.l.b16 %v59
  %v266 = vunpack.c.h.b16 %v59
  %v267 = vunpack.c.l.b16 %v60
  %v268 = vunpack.c.h.b16 %v60
  %v269 = vunpack.c.l.b16 %v61
  %v270 = vunpack.c.h.b16 %v61
  %v271 = vunpack.c.l.b16 %v62
  %v272 = vunpack.c.h.b16 %v62
  %v273 = vunpack.c.l.b16 %v63
  %v274 = vunpack.c.h.b16 %v63
  %v275 = vunpack.c.l.b16 %v64
  %v276 = vunpack.c.h.b16 %v64
  %v277 = vunpack.c.l.b16 %v65
  %v278 = vunpack.c.h.b16 %v65
  %v279 = vunpack.c.l.b16 %v66
  %v280 = vunpack.c.h.b16 %v66
  %v281 = vunpack.c.l.b16 %v67
  %v282 = vunpack.c.h.b16 %v67
  %v283 = vunpack.c.l.b16 %v68
  %v284 = vunpack.c.h.b16 %v68
  %v285 = vunpack.c.l.b16 %v69
  %v286 = vunpack.c.h.b16 %v69
  %v287 = vunpack.c.l.b16 %v70
  %v288 = vunpack.c.h.b16 %v70
  %v289 = vunpack.c.l.b16 %v71
  %v290 = vunpack.c.h.b16 %v71
  %v291 = vunpack.c.l.b16 %v72
  %v292 = vunpack.c.h.b16 %v72
  %v293 = vunpack.c.l.b16 %v73
  %v294 = vunpack.c.h.b16 %v73
  %v295 = vunpack.c.l.b16 %v74
  %v296 = vunpack.c.h.b16 %v74
  %v297 = vunpack.c.l.b16 %v75
  %v298 = vunpack.c.h.b16 %v75
  %v299 = vunpack.c.l.b16 %v76
  %v300 = vunpack.c.h.b16 %v76
  %v301 = vunpack.c.l.b16 %v77
  %v302 = vunpack.c.h.b16 %v77
  %v303 = vunpack.c.l.b16 %v78
  %v304 = vunpack.c.h.b16 %v78
  %v305 = vunpack.c.l.b16 %v79
  %v306 = vunpack.c.h.b16 %v79
  %v307 = vunpack.c.l.b16 %v80
  %v308 = vunpack.c.h.b16 %v80
  %v309 = vunpack.c.l.b16 %v81
  %v310 = vunpack.c.h.b16 %v81
  %v311 = vunpack.c.l.b16 %v82
  %v312 = vunpack.c.h.b16 %v82
  %v313 = vunpack.c.l.b16 %v83
  %v314 = vunpack.c.h.b16 %v83
  %v315 = vunpack.c.l.b16 %v84
  %v316 = vunpack.c.h.b16 %v84
  %v317 = vunpack.c.l.b16 %v85
  %v318 = vunpack.c.h.b16 %v85
  %v319 = vunpack.c.l.b16 %v86
  %v320 = vunpack.c.h.b16 %v86
  %v321 = vunpack.c.l.b16 %v87
  %v322 = vunpack.c.h.b16 %v87
  %v323 = vunpack.c.l.b16 %v88
  %v324 = vunpack.c.h.b16 %v88
  %v325 = vunpack.c.l.b16 %v89
  %v326 = vunpack.c.h.b16 %v89
  %v327 = vunpack.c.l.b16 %v90
  %v328 = vunpack.c.h.b16 %v90
  %v329 = vunpack.c.l.b16 %v91
  %v330 = vunpack.c.h.b16 %v91
  %v331 = vunpack.c.l.b16 %v92
  %v332 = vunpack.c.h.b16 %v92
  %v333 = vpack.c.b16 %v189, %v173
  %v334 = vpack.c.b16 %v190, %v174
  %v335 = vpack.c.b16 %v191, %v175
  %v336 = vpack.c.b16 %v192, %v176
  %v337 = vpack.c.b16 %v193, %v177
  %v338 = vpack.c.b16 %v194, %v178
  %v339 = vpack.c.b16 %v195, %v179
  %v340 = vpack.c.b16 %v196, %v180
  %v341 = vpack.c.b16 %v197, %v181
  %v342 = vpack.c.b16 %v198, %v182
  %v343 = vpack.c.b16 %v199, %v183
  %v344 = vpack.c.b16 %v200, %v184
  %v345 = vpack.c.b16 %v201, %v185
  %v346 = vpack.c.b16 %v202, %v186
  %v347 = vpack.c.b16 %v203, %v187
  %v348 = vpack.c.b16 %v204, %v188
  %v349 = vpack.c.b16 %v221, %v205
  %v350 = vpack.c.b16 %v222, %v206
  %v351 = vpack.c.b16 %v223, %v207
  %v352 = vpack.c.b16 %v224, %v208
  %v353 = vpack.c.b16 %v225, %v209
  %v354 = vpack.c.b16 %v226, %v210
  %v355 = vpack.c.b16 %v227, %v211
  %v356 = vpack.c.b16 %v228, %v212
  %v357 = vpack.c.b16 %v229, %v213
  %v358 = vpack.c.b16 %v230, %v214
  %v359 = vpack.c.b16 %v231, %v215
  %v360 = vpack.c.b16 %v232, %v216
  %v361 = vpack.c.b16 %v233, %v217
  %v362 = vpack.c.b16 %v234, %v218
  %v363 = vpack.c.b16 %v235, %v219
  %v364 = vpack.c.b16 %v236, %v220
  %v365 = vpack.c.b16 %v253, %v237
  %v366 = vpack.c.b16 %v254, %v238
  %v367 = vpack.c.b16 %v255, %v239
  %v368 = vpack.c.b16 %v256, %v240
  %v369 = vpack.c.b16 %v257, %v241
  %v370 = vpack.c.b16 %v258, %v242
  %v371 = vpack.c.b16 %v259, %v243
  %v372 = vpack.c.b16 %v260, %v244
  %v373 = vpack.c.b16 %v261, %v245
  %v374 = vpack.c.b16 %v262, %v246
  %v375 = vpack.c.b16 %v263, %v247
  %v376 = vpack.c.b16 %v264, %v248
  %v377 = vpack.c.b16 %v265, %v249
  %v378 = vpack.c.b16 %v266, %v250
  %v379 = vpack.c.b16 %v267, %v251
  %v380 = vpack.c.b16 %v268, %v252
  %v381 = vpack.c.b16 %v285, %v269
  %v382 = vpack.c.b16 %v286, %v270
  %v383 = vpack.c.b16 %v287, %v271
  %v384 = vpack.c.b16 %v288, %v272
  %v385 = vpack.c.b16 %v289, %v273
  %v386 = vpack.c.b16 %v290, %v274
  %v387 = vpack.c.b16 %v291, %v275
  %v388 = vpack.c.b16 %v292, %v276
  %v389 = vpack.c.b16 %v293, %v277
  %v390 = vpack.c.b16 %v294, %v278
  %v391 = vpack.c.b16 %v295, %v279
  %v392 = vpack.c.b16 %v296, %v280
  %v393 = vpack.c.b16 %v297, %v281
  %v394 = vpack.c.b16 %v298, %v282
  %v395 = vpack.c.b16 %v299, %v283
  %v396 = vpack.c.b16 %v300, %v284
  %v397 = vpack.c.b16 %v317, %v301
  %v398 = vpack.c.b16 %v318, %v302
  %v399 = vpack.c.b16 %v319, %v303
  %v400 = vpack.c.b16 %v320, %v304
  %v401 = vpack.c.b16 %v321, %v305
  %v402 = vpack.c.b16 %v322, %v306
  %v403 = vpack.c.b16 %v323, %v307
  %v404 = vpack.c.b16 %v324, %v308
  %v405 = vpack.c.b16 %v325, %v309
  %v406 = vpack.c.b16 %v326, %v310
  %v407 = vpack.c.b16 %v327, %v311
  %v408 = vpack.c.b16 %v328, %v312
  %v409 = vpack.c.b16 %v329, %v313
  %v410 = vpack.c.b16 %v330, %v314
  %v411 = vpack.c.b16 %v331, %v315
  %v412 = vpack.c.b16 %v332, %v316
  %vm493 = vcmask 654336
  %v495 = vsel %vm493, %v12, 0
  %497 = vmatprep.subr.bf16.mxu0 %v334
  %498 = vmatpush1.bf16.msra.mxu0 %v333
  %499 = vmatprep.subr.bf16.mxu0 %v350
  %500 = vmatpush1.bf16.msra.mxu0 %v349
  %501 = vmatprep.subr.bf16.mxu0 %v366
  %502 = vmatpush1.bf16.msra.mxu0 %v365
  %503 = vmatprep.subr.bf16.mxu0 %v382
  %504 = vmatpush1.bf16.msra.mxu0 %v381
  %505 = vmatprep.subr.bf16.mxu0 %v398
  %506 = vmatpush1.bf16.msra.mxu0 %v397
  %507 = vmatprep.subr.bf16.mxu0 0
  %508 = vmatpush1.bf16.msra.mxu0 0
  %509 = vmatprep.subr.bf16.mxu0 0
  %510 = vmatpush1.bf16.msra.mxu0 0
  %511 = vmatprep.subr.bf16.mxu0 0
  %512 = vmatpush1.bf16.msra.mxu0 0
  %513 = vmatprep.subr.bf16.mxu0 0
  %514 = vmatpush1.bf16.msra.mxu0 0
  %515 = vmatprep.subr.bf16.mxu0 0
  %516 = vmatpush1.bf16.msra.mxu0 0
  %517 = vmatprep.subr.bf16.mxu0 0
  %518 = vmatpush1.bf16.msra.mxu0 0
  %519 = vmatprep.subr.bf16.mxu0 0
  %520 = vmatpush1.bf16.msra.mxu0 0
  %521 = vmatprep.subr.bf16.mxu0 0
  %522 = vmatpush1.bf16.msra.mxu0 0
  %523 = vmatprep.subr.bf16.mxu0 0
  %524 = vmatpush1.bf16.msra.mxu0 0
  %525 = vmatprep.subr.bf16.mxu0 0
  %526 = vmatpush1.bf16.msra.mxu0 0
  %527 = vmatprep.subr.bf16.mxu0 0
  %528 = vmatpush1.bf16.msra.mxu0 0
  %529 = vmatprep.mubr.bf16.mxu0 0
  %530 = vmatmul.mubr.bf16.gmra.mrb[0].mxu0 %v495
  %v531 = vpop.f32.mrb[0].mxu0
  %v532 = vadd.f32 0.0, %v531
  %v533 = vpop.f32.mrb[0].mxu0
  %v534 = vadd.f32 0.0, %v533
  %v535 = vpop.f32.mrb[0].mxu0
  %v536 = vpop.f32.mrb[0].mxu0
  %537 = vdwg.mxu0
  %538 = vmatprep.subr.bf16.mxu0 %v336
  %539 = vmatpush1.bf16.msra.mxu0 %v335
  %540 = vmatprep.subr.bf16.mxu0 %v352
  %541 = vmatpush1.bf16.msra.mxu0 %v351
  %542 = vmatprep.subr.bf16.mxu0 %v368
  %543 = vmatpush1.bf16.msra.mxu0 %v367
  %544 = vmatprep.subr.bf16.mxu0 %v384
  %545 = vmatpush1.bf16.msra.mxu0 %v383
  %546 = vmatprep.subr.bf16.mxu0 %v400
  %547 = vmatpush1.bf16.msra.mxu0 %v399
  %548 = vmatprep.subr.bf16.mxu0 0
  %549 = vmatpush1.bf16.msra.mxu0 0
  %550 = vmatprep.subr.bf16.mxu0 0
  %551 = vmatpush1.bf16.msra.mxu0 0
  %552 = vmatprep.subr.bf16.mxu0 0
  %553 = vmatpush1.bf16.msra.mxu0 0
  %554 = vmatprep.subr.bf16.mxu0 0
  %555 = vmatpush1.bf16.msra.mxu0 0
  %556 = vmatprep.subr.bf16.mxu0 0
  %557 = vmatpush1.bf16.msra.mxu0 0
  %558 = vmatprep.subr.bf16.mxu0 0
  %559 = vmatpush1.bf16.msra.mxu0 0
  %560 = vmatprep.subr.bf16.mxu0 0
  %561 = vmatpush1.bf16.msra.mxu0 0
  %562 = vmatprep.subr.bf16.mxu0 0
  %563 = vmatpush1.bf16.msra.mxu0 0
  %564 = vmatprep.subr.bf16.mxu0 0
  %565 = vmatpush1.bf16.msra.mxu0 0
  %566 = vmatprep.subr.bf16.mxu0 0
  %567 = vmatpush1.bf16.msra.mxu0 0
  %568 = vmatprep.subr.bf16.mxu0 0
  %569 = vmatpush1.bf16.msra.mxu0 0
  %570 = vmatprep.mubr.bf16.mxu0 0
  %571 = vmatmul.mubr.bf16.gmra.mrb[0].mxu0 %v495
  %v572 = vpop.f32.mrb[0].mxu0
  %v573 = vadd.f32 0.0, %v572
  %v574 = vpop.f32.mrb[0].mxu0
  %v575 = vadd.f32 0.0, %v574
  %v576 = vpop.f32.mrb[0].mxu0
  %v577 = vpop.f32.mrb[0].mxu0
  %578 = vdwg.mxu0
  %579 = vmatprep.subr.bf16.mxu0 %v338
  %580 = vmatpush1.bf16.msra.mxu0 %v337
  %581 = vmatprep.subr.bf16.mxu0 %v354
  %582 = vmatpush1.bf16.msra.mxu0 %v353
  %583 = vmatprep.subr.bf16.mxu0 %v370
  %584 = vmatpush1.bf16.msra.mxu0 %v369
  %585 = vmatprep.subr.bf16.mxu0 %v386
  %586 = vmatpush1.bf16.msra.mxu0 %v385
  %587 = vmatprep.subr.bf16.mxu0 %v402
  %588 = vmatpush1.bf16.msra.mxu0 %v401
  %589 = vmatprep.subr.bf16.mxu0 0
  %590 = vmatpush1.bf16.msra.mxu0 0
  %591 = vmatprep.subr.bf16.mxu0 0
  %592 = vmatpush1.bf16.msra.mxu0 0
  %593 = vmatprep.subr.bf16.mxu0 0
  %594 = vmatpush1.bf16.msra.mxu0 0
  %595 = vmatprep.subr.bf16.mxu0 0
  %596 = vmatpush1.bf16.msra.mxu0 0
  %597 = vmatprep.subr.bf16.mxu0 0
  %598 = vmatpush1.bf16.msra.mxu0 0
  %599 = vmatprep.subr.bf16.mxu0 0
  %600 = vmatpush1.bf16.msra.mxu0 0
  %601 = vmatprep.subr.bf16.mxu0 0
  %602 = vmatpush1.bf16.msra.mxu0 0
  %603 = vmatprep.subr.bf16.mxu0 0
  %604 = vmatpush1.bf16.msra.mxu0 0
  %605 = vmatprep.subr.bf16.mxu0 0
  %606 = vmatpush1.bf16.msra.mxu0 0
  %607 = vmatprep.subr.bf16.mxu0 0
  %608 = vmatpush1.bf16.msra.mxu0 0
  %609 = vmatprep.subr.bf16.mxu0 0
  %610 = vmatpush1.bf16.msra.mxu0 0
  %611 = vmatprep.mubr.bf16.mxu0 0
  %612 = vmatmul.mubr.bf16.gmra.mrb[0].mxu0 %v495
  %v613 = vpop.f32.mrb[0].mxu0
  %v614 = vadd.f32 0.0, %v613
  %v615 = vpop.f32.mrb[0].mxu0
  %v616 = vadd.f32 0.0, %v615
  %v617 = vpop.f32.mrb[0].mxu0
  %v618 = vpop.f32.mrb[0].mxu0
  %619 = vdwg.mxu0
  %620 = vmatprep.subr.bf16.mxu0 %v340
  %621 = vmatpush1.bf16.msra.mxu0 %v339
  %622 = vmatprep.subr.bf16.mxu0 %v356
  %623 = vmatpush1.bf16.msra.mxu0 %v355
  %624 = vmatprep.subr.bf16.mxu0 %v372
  %625 = vmatpush1.bf16.msra.mxu0 %v371
  %626 = vmatprep.subr.bf16.mxu0 %v388
  %627 = vmatpush1.bf16.msra.mxu0 %v387
  %628 = vmatprep.subr.bf16.mxu0 %v404
  %629 = vmatpush1.bf16.msra.mxu0 %v403
  %630 = vmatprep.subr.bf16.mxu0 0
  %631 = vmatpush1.bf16.msra.mxu0 0
  %632 = vmatprep.subr.bf16.mxu0 0
  %633 = vmatpush1.bf16.msra.mxu0 0
  %634 = vmatprep.subr.bf16.mxu0 0
  %635 = vmatpush1.bf16.msra.mxu0 0
  %636 = vmatprep.subr.bf16.mxu0 0
  %637 = vmatpush1.bf16.msra.mxu0 0
  %638 = vmatprep.subr.bf16.mxu0 0
  %639 = vmatpush1.bf16.msra.mxu0 0
  %640 = vmatprep.subr.bf16.mxu0 0
  %641 = vmatpush1.bf16.msra.mxu0 0
  %642 = vmatprep.subr.bf16.mxu0 0
  %643 = vmatpush1.bf16.msra.mxu0 0
  %644 = vmatprep.subr.bf16.mxu0 0
  %645 = vmatpush1.bf16.msra.mxu0 0
  %646 = vmatprep.subr.bf16.mxu0 0
  %647 = vmatpush1.bf16.msra.mxu0 0
  %648 = vmatprep.subr.bf16.mxu0 0
  %649 = vmatpush1.bf16.msra.mxu0 0
  %650 = vmatprep.subr.bf16.mxu0 0
  %651 = vmatpush1.bf16.msra.mxu0 0
  %652 = vmatprep.mubr.bf16.mxu0 0
  %653 = vmatmul.mubr.bf16.gmra.mrb[0].mxu0 %v495
  %v654 = vpop.f32.mrb[0].mxu0
  %v655 = vadd.f32 0.0, %v654
  %v656 = vpop.f32.mrb[0].mxu0
  %v657 = vadd.f32 0.0, %v656
  %v658 = vpop.f32.mrb[0].mxu0
  %v659 = vpop.f32.mrb[0].mxu0
  %660 = vdwg.mxu0
  %661 = vmatprep.subr.bf16.mxu0 %v342
  %662 = vmatpush1.bf16.msra.mxu0 %v341
  %663 = vmatprep.subr.bf16.mxu0 %v358
  %664 = vmatpush1.bf16.msra.mxu0 %v357
  %665 = vmatprep.subr.bf16.mxu0 %v374
  %666 = vmatpush1.bf16.msra.mxu0 %v373
  %667 = vmatprep.subr.bf16.mxu0 %v390
  %668 = vmatpush1.bf16.msra.mxu0 %v389
  %669 = vmatprep.subr.bf16.mxu0 %v406
  %670 = vmatpush1.bf16.msra.mxu0 %v405
  %671 = vmatprep.subr.bf16.mxu0 0
  %672 = vmatpush1.bf16.msra.mxu0 0
  %673 = vmatprep.subr.bf16.mxu0 0
  %674 = vmatpush1.bf16.msra.mxu0 0
  %675 = vmatprep.subr.bf16.mxu0 0
  %676 = vmatpush1.bf16.msra.mxu0 0
  %677 = vmatprep.subr.bf16.mxu0 0
  %678 = vmatpush1.bf16.msra.mxu0 0
  %679 = vmatprep.subr.bf16.mxu0 0
  %680 = vmatpush1.bf16.msra.mxu0 0
  %681 = vmatprep.subr.bf16.mxu0 0
  %682 = vmatpush1.bf16.msra.mxu0 0
  %683 = vmatprep.subr.bf16.mxu0 0
  %684 = vmatpush1.bf16.msra.mxu0 0
  %685 = vmatprep.subr.bf16.mxu0 0
  %686 = vmatpush1.bf16.msra.mxu0 0
  %687 = vmatprep.subr.bf16.mxu0 0
  %688 = vmatpush1.bf16.msra.mxu0 0
  %689 = vmatprep.subr.bf16.mxu0 0
  %690 = vmatpush1.bf16.msra.mxu0 0
  %691 = vmatprep.subr.bf16.mxu0 0
  %692 = vmatpush1.bf16.msra.mxu0 0
  %693 = vmatprep.mubr.bf16.mxu0 0
  %694 = vmatmul.mubr.bf16.gmra.mrb[0].mxu0 %v495
  %v695 = vpop.f32.mrb[0].mxu0
  %v696 = vadd.f32 0.0, %v695
  %v697 = vpop.f32.mrb[0].mxu0
  %v698 = vadd.f32 0.0, %v697
  %v699 = vpop.f32.mrb[0].mxu0
  %v700 = vpop.f32.mrb[0].mxu0
  %701 = vdwg.mxu0
  %702 = vmatprep.subr.bf16.mxu0 %v344
  %703 = vmatpush1.bf16.msra.mxu0 %v343
  %704 = vmatprep.subr.bf16.mxu0 %v360
  %705 = vmatpush1.bf16.msra.mxu0 %v359
  %706 = vmatprep.subr.bf16.mxu0 %v376
  %707 = vmatpush1.bf16.msra.mxu0 %v375
  %708 = vmatprep.subr.bf16.mxu0 %v392
  %709 = vmatpush1.bf16.msra.mxu0 %v391
  %710 = vmatprep.subr.bf16.mxu0 %v408
  %711 = vmatpush1.bf16.msra.mxu0 %v407
  %712 = vmatprep.subr.bf16.mxu0 0
  %713 = vmatpush1.bf16.msra.mxu0 0
  %714 = vmatprep.subr.bf16.mxu0 0
  %715 = vmatpush1.bf16.msra.mxu0 0
  %716 = vmatprep.subr.bf16.mxu0 0
  %717 = vmatpush1.bf16.msra.mxu0 0
  %718 = vmatprep.subr.bf16.mxu0 0
  %719 = vmatpush1.bf16.msra.mxu0 0
  %720 = vmatprep.subr.bf16.mxu0 0
  %721 = vmatpush1.bf16.msra.mxu0 0
  %722 = vmatprep.subr.bf16.mxu0 0
  %723 = vmatpush1.bf16.msra.mxu0 0
  %724 = vmatprep.subr.bf16.mxu0 0
  %725 = vmatpush1.bf16.msra.mxu0 0
  %726 = vmatprep.subr.bf16.mxu0 0
  %727 = vmatpush1.bf16.msra.mxu0 0
  %728 = vmatprep.subr.bf16.mxu0 0
  %729 = vmatpush1.bf16.msra.mxu0 0
  %730 = vmatprep.subr.bf16.mxu0 0
  %731 = vmatpush1.bf16.msra.mxu0 0
  %732 = vmatprep.subr.bf16.mxu0 0
  %733 = vmatpush1.bf16.msra.mxu0 0
  %734 = vmatprep.mubr.bf16.mxu0 0
  %735 = vmatmul.mubr.bf16.gmra.mrb[0].mxu0 %v495
  %v736 = vpop.f32.mrb[0].mxu0
  %v737 = vadd.f32 0.0, %v736
  %v738 = vpop.f32.mrb[0].mxu0
  %v739 = vadd.f32 0.0, %v738
  %v740 = vpop.f32.mrb[0].mxu0
  %v741 = vpop.f32.mrb[0].mxu0
  %742 = vdwg.mxu0
  %743 = vmatprep.subr.bf16.mxu0 %v346
  %744 = vmatpush1.bf16.msra.mxu0 %v345
  %745 = vmatprep.subr.bf16.mxu0 %v362
  %746 = vmatpush1.bf16.msra.mxu0 %v361
  %747 = vmatprep.subr.bf16.mxu0 %v378
  %748 = vmatpush1.bf16.msra.mxu0 %v377
  %749 = vmatprep.subr.bf16.mxu0 %v394
  %750 = vmatpush1.bf16.msra.mxu0 %v393
  %751 = vmatprep.subr.bf16.mxu0 %v410
  %752 = vmatpush1.bf16.msra.mxu0 %v409
  %753 = vmatprep.subr.bf16.mxu0 0
  %754 = vmatpush1.bf16.msra.mxu0 0
  %755 = vmatprep.subr.bf16.mxu0 0
  %756 = vmatpush1.bf16.msra.mxu0 0
  %757 = vmatprep.subr.bf16.mxu0 0
  %758 = vmatpush1.bf16.msra.mxu0 0
  %759 = vmatprep.subr.bf16.mxu0 0
  %760 = vmatpush1.bf16.msra.mxu0 0
  %761 = vmatprep.subr.bf16.mxu0 0
  %762 = vmatpush1.bf16.msra.mxu0 0
  %763 = vmatprep.subr.bf16.mxu0 0
  %764 = vmatpush1.bf16.msra.mxu0 0
  %765 = vmatprep.subr.bf16.mxu0 0
  %766 = vmatpush1.bf16.msra.mxu0 0
  %767 = vmatprep.subr.bf16.mxu0 0
  %768 = vmatpush1.bf16.msra.mxu0 0
  %769 = vmatprep.subr.bf16.mxu0 0
  %770 = vmatpush1.bf16.msra.mxu0 0
  %771 = vmatprep.subr.bf16.mxu0 0
  %772 = vmatpush1.bf16.msra.mxu0 0
  %773 = vmatprep.subr.bf16.mxu0 0
  %774 = vmatpush1.bf16.msra.mxu0 0
  %775 = vmatprep.mubr.bf16.mxu0 0
  %776 = vmatmul.mubr.bf16.gmra.mrb[0].mxu0 %v495
  %v777 = vpop.f32.mrb[0].mxu0
  %v778 = vadd.f32 0.0, %v777
  %v779 = vpop.f32.mrb[0].mxu0
  %v780 = vadd.f32 0.0, %v779
  %v781 = vpop.f32.mrb[0].mxu0
  %v782 = vpop.f32.mrb[0].mxu0
  %783 = vdwg.mxu0
  %784 = vmatprep.subr.bf16.mxu0 %v348
  %785 = vmatpush1.bf16.msra.mxu0 %v347
  %786 = vmatprep.subr.bf16.mxu0 %v364
  %787 = vmatpush1.bf16.msra.mxu0 %v363
  %788 = vmatprep.subr.bf16.mxu0 %v380
  %789 = vmatpush1.bf16.msra.mxu0 %v379
  %790 = vmatprep.subr.bf16.mxu0 %v396
  %791 = vmatpush1.bf16.msra.mxu0 %v395
  %792 = vmatprep.subr.bf16.mxu0 %v412
  %793 = vmatpush1.bf16.msra.mxu0 %v411
  %794 = vmatprep.subr.bf16.mxu0 0
  %795 = vmatpush1.bf16.msra.mxu0 0
  %796 = vmatprep.subr.bf16.mxu0 0
  %797 = vmatpush1.bf16.msra.mxu0 0
  %798 = vmatprep.subr.bf16.mxu0 0
  %799 = vmatpush1.bf16.msra.mxu0 0
  %800 = vmatprep.subr.bf16.mxu0 0
  %801 = vmatpush1.bf16.msra.mxu0 0
  %802 = vmatprep.subr.bf16.mxu0 0
  %803 = vmatpush1.bf16.msra.mxu0 0
  %804 = vmatprep.subr.bf16.mxu0 0
  %805 = vmatpush1.bf16.msra.mxu0 0
  %806 = vmatprep.subr.bf16.mxu0 0
  %807 = vmatpush1.bf16.msra.mxu0 0
  %808 = vmatprep.subr.bf16.mxu0 0
  %809 = vmatpush1.bf16.msra.mxu0 0
  %810 = vmatprep.subr.bf16.mxu0 0
  %811 = vmatpush1.bf16.msra.mxu0 0
  %812 = vmatprep.subr.bf16.mxu0 0
  %813 = vmatpush1.bf16.msra.mxu0 0
  %814 = vmatprep.subr.bf16.mxu0 0
  %815 = vmatpush1.bf16.msra.mxu0 0
  %816 = vmatprep.mubr.bf16.mxu0 0
  %817 = vmatmul.mubr.bf16.gmra.mrb[0].mxu0 %v495
  %v818 = vpop.f32.mrb[0].mxu0
  %v819 = vadd.f32 0.0, %v818
  %v820 = vpop.f32.mrb[0].mxu0
  %v821 = vadd.f32 0.0, %v820
  %v822 = vpop.f32.mrb[0].mxu0
  %v823 = vpop.f32.mrb[0].mxu0
  %824 = vdwg.mxu0
  %vm825 = vcmp.gt.f32.partialorder %v532, 0.0
  %vm826 = vcmp.gt.f32.partialorder %v534, 0.0
  %vm827 = vcmp.gt.f32.partialorder %v573, 0.0
  %vm828 = vcmp.gt.f32.partialorder %v575, 0.0
  %vm829 = vcmp.gt.f32.partialorder %v614, 0.0
  %vm830 = vcmp.gt.f32.partialorder %v616, 0.0
  %vm831 = vcmp.gt.f32.partialorder %v655, 0.0
  %vm832 = vcmp.gt.f32.partialorder %v657, 0.0
  %vm833 = vcmp.gt.f32.partialorder %v696, 0.0
  %vm834 = vcmp.gt.f32.partialorder %v698, 0.0
  %vm835 = vcmp.gt.f32.partialorder %v737, 0.0
  %vm836 = vcmp.gt.f32.partialorder %v739, 0.0
  %vm837 = vcmp.gt.f32.partialorder %v778, 0.0
  %vm838 = vcmp.gt.f32.partialorder %v780, 0.0
  %vm839 = vcmp.gt.f32.partialorder %v819, 0.0
  %vm840 = vcmp.gt.f32.partialorder %v821, 0.0
  %v841 = vmul.f32 %v532, 0.2
  %v842 = vmul.f32 %v534, 0.2
  %v843 = vmul.f32 %v573, 0.2
  %v844 = vmul.f32 %v575, 0.2
  %v845 = vmul.f32 %v614, 0.2
  %v846 = vmul.f32 %v616, 0.2
  %v847 = vmul.f32 %v655, 0.2
  %v848 = vmul.f32 %v657, 0.2
  %v849 = vmul.f32 %v696, 0.2
  %v850 = vmul.f32 %v698, 0.2
  %v851 = vmul.f32 %v737, 0.2
  %v852 = vmul.f32 %v739, 0.2
  %v853 = vmul.f32 %v778, 0.2
  %v854 = vmul.f32 %v780, 0.2
  %v855 = vmul.f32 %v819, 0.2
  %v856 = vmul.f32 %v821, 0.2
  %v857 = vsel %vm825, %v532, %v841
  %v858 = vsel %vm826, %v534, %v842
  %v859 = vsel %vm827, %v573, %v843
  %v860 = vsel %vm828, %v575, %v844
  %v861 = vsel %vm829, %v614, %v845
  %v862 = vsel %vm830, %v616, %v846
  %v863 = vsel %vm831, %v655, %v847
  %v864 = vsel %vm832, %v657, %v848
  %v865 = vsel %vm833, %v696, %v849
  %v866 = vsel %vm834, %v698, %v850
  %v867 = vsel %vm835, %v737, %v851
  %v868 = vsel %vm836, %v739, %v852
  %v869 = vsel %vm837, %v778, %v853
  %v870 = vsel %vm838, %v780, %v854
  %v871 = vsel %vm839, %v819, %v855
  %v872 = vsel %vm840, %v821, %v856
  %v873 = vpack.c.bf16 %v857, %v857
  %v874 = vpack.c.bf16 %v858, %v858
  %v875 = vpack.c.bf16 %v859, %v859
  %v876 = vpack.c.bf16 %v860, %v860
  %v877 = vpack.c.bf16 %v861, %v861
  %v878 = vpack.c.bf16 %v862, %v862
  %v879 = vpack.c.bf16 %v863, %v863
  %v880 = vpack.c.bf16 %v864, %v864
  %v881 = vpack.c.bf16 %v865, %v865
  %v882 = vpack.c.bf16 %v866, %v866
  %v883 = vpack.c.bf16 %v867, %v867
  %v884 = vpack.c.bf16 %v868, %v868
  %v885 = vpack.c.bf16 %v869, %v869
  %v886 = vpack.c.bf16 %v870, %v870
  %v887 = vpack.c.bf16 %v871, %v871
  %v888 = vpack.c.bf16 %v872, %v872
  %v905 = vunpack.c.l.b16 %v873
  %v906 = vunpack.c.l.b16 %v874
  %v907 = vunpack.c.l.b16 %v875
  %v908 = vunpack.c.l.b16 %v876
  %v909 = vunpack.c.l.b16 %v877
  %v910 = vunpack.c.l.b16 %v878
  %v911 = vunpack.c.l.b16 %v879
  %v912 = vunpack.c.l.b16 %v880
  %v913 = vunpack.c.l.b16 %v881
  %v914 = vunpack.c.l.b16 %v882
  %v915 = vunpack.c.l.b16 %v883
  %v916 = vunpack.c.l.b16 %v884
  %v917 = vunpack.c.l.b16 %v885
  %v918 = vunpack.c.l.b16 %v886
  %v919 = vunpack.c.l.b16 %v887
  %v920 = vunpack.c.l.b16 %v888
  %v921 = vpack.c.b16 %v906, %v905
  %v922 = vpack.c.b16 %v908, %v907
  %v923 = vpack.c.b16 %v910, %v909
  %v924 = vpack.c.b16 %v912, %v911
  %v925 = vpack.c.b16 %v914, %v913
  %v926 = vpack.c.b16 %v916, %v915
  %v927 = vpack.c.b16 %v918, %v917
  %v928 = vpack.c.b16 %v920, %v919
  %937 = vst [vmem:[%s2] sm:$0xff] %v921
  %938 = vst [vmem:[%s2 + $0x8] sm:$0xff] %v922
  %939 = vst [vmem:[%s2 + $0x10] sm:$0xff] %v923
  %940 = vst [vmem:[%s2 + $0x18] sm:$0xff] %v924
  %941 = vst [vmem:[%s2 + $0x20] sm:$0xff] %v925
  %942 = vst [vmem:[%s2 + $0x28] sm:$0xff] %v926
  %943 = vst [vmem:[%s2 + $0x30] sm:$0xff] %v927
  %944 = vst [vmem:[%s2 + $0x38] sm:$0xff] %v928
  // Predicated region
  $region10: #{netd_forward.4} parent=0 // pred_check
    _
  $region11: #{netd_forward.4} parent=0 // pred_check_branch
    %946 = sbr.rel (0) target = $region13
  $region12: #{netd_forward.4} parent=0 // pred_region
    _
  $region13: #{netd_forward.4} parent=0 // pred_fallthru
    _
  // Predicated region
  $region14: #{netd_forward.4} parent=0 // pred_check
    _
  $region15: #{netd_forward.4} parent=0 // pred_check_branch
    %948 = sbr.rel (0) target = $region17
  $region16: #{netd_forward.4} parent=0 // pred_region
    _
  $region17: #{netd_forward.4} parent=0 // pred_fallthru
    _

// kernel: netd_forward.5
$region0: #{netd_forward.5}
  #allocation0 [shape = 'u32[]', space=smem, size = 0x4, offset = 0x4, fixed_abs, tag = 'smem constant byte address 0x4 - core index']
  #allocation1 [shape = 'u32[144,128]{1,0:T(1,128)}', space=vmem, size = 0x12000, scoped, tag = 'internal scratch']
  %s0 = inlined_call_operand.vmem [shape: bf16[16,128], index: 0, kind: input, shape index: {}]
  %s1 = inlined_call_operand.vmem [shape: bf16[128,512], index: 1, kind: input, shape index: {}]
  %s2 = inlined_call_operand.vmem [shape: f32[16,1], index: 2, kind: input, shape index: {}]
  %s3 = inlined_call_operand.vmem [shape: f32[16,1], index: 3, kind: input, shape index: {}]
  %s4 = inlined_call_operand.vmem [shape: bf16[16,512], index: 4, kind: output, shape index: {}]
  %s5 = sld [smem:[#allocation0]]
  $region26: #{netd_forward.5} parent=0
    _
  %s7 = ssub.s32 1, %s5
  %s8 = scalar_select 0, %s7, %s5
  // Predicated region
  $region2: #{netd_forward.5} parent=0 // pred_check
    _
  $region3: #{netd_forward.5} parent=0 // pred_check_branch
    %10 = sbr.rel (0) target = $region5
  $region4: #{netd_forward.5} parent=0 // pred_region
    _
  $region5: #{netd_forward.5} parent=0 // pred_fallthru
    _
  // Predicated region
  $region6: #{netd_forward.5} parent=0 // pred_check
    _
  $region7: #{netd_forward.5} parent=0 // pred_check_branch
    %12 = sbr.rel (0) target = $region9
  $region8: #{netd_forward.5} parent=0 // pred_region
    _
  $region9: #{netd_forward.5} parent=0 // pred_fallthru
    _
  // Predicated region
  $region10: #{netd_forward.5} parent=0 // pred_check
    _
  $region11: #{netd_forward.5} parent=0 // pred_check_branch
    %14 = sbr.rel (0) target = $region13
  $region12: #{netd_forward.5} parent=0 // pred_region
    _
  $region13: #{netd_forward.5} parent=0 // pred_fallthru
    _
  // Predicated region
  $region14: #{netd_forward.5} parent=0 // pred_check
    _
  $region15: #{netd_forward.5} parent=0 // pred_check_branch
    %16 = sbr.rel (0) target = $region17
  $region16: #{netd_forward.5} parent=0 // pred_region
    _
  $region17: #{netd_forward.5} parent=0 // pred_fallthru
    _
  %v18 = vld [vmem:[%s0] sm:$0xf]
  %v19 = vld [vmem:[%s0 + $0x4] sm:$0xf]
  %v20 = vld [vmem:[%s1] sm:$0xff]
  %v21 = vld [vmem:[%s1 + $0x8] sm:$0xff]
  %v22 = vld [vmem:[%s1 + $0x10] sm:$0xff]
  %v23 = vld [vmem:[%s1 + $0x18] sm:$0xff]
  %v24 = vld [vmem:[%s1 + $0x20] sm:$0xff]
  %v25 = vld [vmem:[%s1 + $0x28] sm:$0xff]
  %v26 = vld [vmem:[%s1 + $0x30] sm:$0xff]
  %v27 = vld [vmem:[%s1 + $0x38] sm:$0xff]
  %v28 = vld [vmem:[%s1 + $0x40] sm:$0xff]
  %v29 = vld [vmem:[%s1 + $0x48] sm:$0xff]
  %v30 = vld [vmem:[%s1 + $0x50] sm:$0xff]
  %v31 = vld [vmem:[%s1 + $0x58] sm:$0xff]
  %v32 = vld [vmem:[%s1 + $0x60] sm:$0xff]
  %v33 = vld [vmem:[%s1 + $0x68] sm:$0xff]
  %v34 = vld [vmem:[%s1 + $0x70] sm:$0xff]
  %v35 = vld [vmem:[%s1 + $0x78] sm:$0xff]
  %v36 = vld [vmem:[%s1 + $0x80] sm:$0xff]
  %v37 = vld [vmem:[%s1 + $0x88] sm:$0xff]
  %v38 = vld [vmem:[%s1 + $0x90] sm:$0xff]
  %v39 = vld [vmem:[%s1 + $0x98] sm:$0xff]
  %v40 = vld [vmem:[%s1 + $0xa0] sm:$0xff]
  %v41 = vld [vmem:[%s1 + $0xa8] sm:$0xff]
  %v42 = vld [vmem:[%s1 + $0xb0] sm:$0xff]
  %v43 = vld [vmem:[%s1 + $0xb8] sm:$0xff]
  %v44 = vld [vmem:[%s1 + $0xc0] sm:$0xff]
  %v45 = vld [vmem:[%s1 + $0xc8] sm:$0xff]
  %v46 = vld [vmem:[%s1 + $0xd0] sm:$0xff]
  %v47 = vld [vmem:[%s1 + $0xd8] sm:$0xff]
  %v48 = vld [vmem:[%s1 + $0xe0] sm:$0xff]
  %v49 = vld [vmem:[%s1 + $0xe8] sm:$0xff]
  %v50 = vld [vmem:[%s1 + $0xf0] sm:$0xff]
  %v51 = vld [vmem:[%s1 + $0xf8] sm:$0xff]
  %v54 = vunpack.c.l.b16 %v18
  %v55 = vunpack.c.l.b16 %v19
  %v56 = vpack.c.b16 %v55, %v54
  %v90 = vunpack.c.l.b16 %v20
  %v91 = vunpack.c.h.b16 %v20
  %v92 = vunpack.c.l.b16 %v21
  %v93 = vunpack.c.h.b16 %v21
  %v94 = vunpack.c.l.b16 %v22
  %v95 = vunpack.c.h.b16 %v22
  %v96 = vunpack.c.l.b16 %v23
  %v97 = vunpack.c.h.b16 %v23
  %v98 = vunpack.c.l.b16 %v24
  %v99 = vunpack.c.h.b16 %v24
  %v100 = vunpack.c.l.b16 %v25
  %v101 = vunpack.c.h.b16 %v25
  %v102 = vunpack.c.l.b16 %v26
  %v103 = vunpack.c.h.b16 %v26
  %v104 = vunpack.c.l.b16 %v27
  %v105 = vunpack.c.h.b16 %v27
  %v106 = vunpack.c.l.b16 %v28
  %v107 = vunpack.c.h.b16 %v28
  %v108 = vunpack.c.l.b16 %v29
  %v109 = vunpack.c.h.b16 %v29
  %v110 = vunpack.c.l.b16 %v30
  %v111 = vunpack.c.h.b16 %v30
  %v112 = vunpack.c.l.b16 %v31
  %v113 = vunpack.c.h.b16 %v31
  %v114 = vunpack.c.l.b16 %v32
  %v115 = vunpack.c.h.b16 %v32
  %v116 = vunpack.c.l.b16 %v33
  %v117 = vunpack.c.h.b16 %v33
  %v118 = vunpack.c.l.b16 %v34
  %v119 = vunpack.c.h.b16 %v34
  %v120 = vunpack.c.l.b16 %v35
  %v121 = vunpack.c.h.b16 %v35
  %v122 = vunpack.c.l.b16 %v36
  %v123 = vunpack.c.h.b16 %v36
  %v124 = vunpack.c.l.b16 %v37
  %v125 = vunpack.c.h.b16 %v37
  %v126 = vunpack.c.l.b16 %v38
  %v127 = vunpack.c.h.b16 %v38
  %v128 = vunpack.c.l.b16 %v39
  %v129 = vunpack.c.h.b16 %v39
  %v130 = vunpack.c.l.b16 %v40
  %v131 = vunpack.c.h.b16 %v40
  %v132 = vunpack.c.l.b16 %v41
  %v133 = vunpack.c.h.b16 %v41
  %v134 = vunpack.c.l.b16 %v42
  %v135 = vunpack.c.h.b16 %v42
  %v136 = vunpack.c.l.b16 %v43
  %v137 = vunpack.c.h.b16 %v43
  %v138 = vunpack.c.l.b16 %v44
  %v139 = vunpack.c.h.b16 %v44
  %v140 = vunpack.c.l.b16 %v45
  %v141 = vunpack.c.h.b16 %v45
  %v142 = vunpack.c.l.b16 %v46
  %v143 = vunpack.c.h.b16 %v46
  %v144 = vunpack.c.l.b16 %v47
  %v145 = vunpack.c.h.b16 %v47
  %v146 = vunpack.c.l.b16 %v48
  %v147 = vunpack.c.h.b16 %v48
  %v148 = vunpack.c.l.b16 %v49
  %v149 = vunpack.c.h.b16 %v49
  %v150 = vunpack.c.l.b16 %v50
  %v151 = vunpack.c.h.b16 %v50
  %v152 = vunpack.c.l.b16 %v51
  %v153 = vunpack.c.h.b16 %v51
  %v154 = vpack.c.b16 %v94, %v90
  %v155 = vpack.c.b16 %v95, %v91
  %v156 = vpack.c.b16 %v96, %v92
  %v157 = vpack.c.b16 %v97, %v93
  %v158 = vpack.c.b16 %v102, %v98
  %v159 = vpack.c.b16 %v103, %v99
  %v160 = vpack.c.b16 %v104, %v100
  %v161 = vpack.c.b16 %v105, %v101
  %v162 = vpack.c.b16 %v110, %v106
  %v163 = vpack.c.b16 %v111, %v107
  %v164 = vpack.c.b16 %v112, %v108
  %v165 = vpack.c.b16 %v113, %v109
  %v166 = vpack.c.b16 %v118, %v114
  %v167 = vpack.c.b16 %v119, %v115
  %v168 = vpack.c.b16 %v120, %v116
  %v169 = vpack.c.b16 %v121, %v117
  %v170 = vpack.c.b16 %v126, %v122
  %v171 = vpack.c.b16 %v127, %v123
  %v172 = vpack.c.b16 %v128, %v124
  %v173 = vpack.c.b16 %v129, %v125
  %v174 = vpack.c.b16 %v134, %v130
  %v175 = vpack.c.b16 %v135, %v131
  %v176 = vpack.c.b16 %v136, %v132
  %v177 = vpack.c.b16 %v137, %v133
  %v178 = vpack.c.b16 %v142, %v138
  %v179 = vpack.c.b16 %v143, %v139
  %v180 = vpack.c.b16 %v144, %v140
  %v181 = vpack.c.b16 %v145, %v141
  %v182 = vpack.c.b16 %v150, %v146
  %v183 = vpack.c.b16 %v151, %v147
  %v184 = vpack.c.b16 %v152, %v148
  %v185 = vpack.c.b16 %v153, %v149
  %218 = vmatprep.subr.bf16.mxu0 %v155
  %219 = vmatpush1.bf16.msra.mxu0 %v154
  %220 = vmatprep.subr.bf16.mxu0 %v159
  %221 = vmatpush1.bf16.msra.mxu0 %v158
  %222 = vmatprep.subr.bf16.mxu0 %v163
  %223 = vmatpush1.bf16.msra.mxu0 %v162
  %224 = vmatprep.subr.bf16.mxu0 %v167
  %225 = vmatpush1.bf16.msra.mxu0 %v166
  %226 = vmatprep.subr.bf16.mxu0 %v171
  %227 = vmatpush1.bf16.msra.mxu0 %v170
  %228 = vmatprep.subr.bf16.mxu0 %v175
  %229 = vmatpush1.bf16.msra.mxu0 %v174
  %230 = vmatprep.subr.bf16.mxu0 %v179
  %231 = vmatpush1.bf16.msra.mxu0 %v178
  %232 = vmatprep.subr.bf16.mxu0 %v183
  %233 = vmatpush1.bf16.msra.mxu0 %v182
  %234 = vmatprep.subr.bf16.mxu0 0
  %235 = vmatpush1.bf16.msra.mxu0 0
  %236 = vmatprep.subr.bf16.mxu0 0
  %237 = vmatpush1.bf16.msra.mxu0 0
  %238 = vmatprep.subr.bf16.mxu0 0
  %239 = vmatpush1.bf16.msra.mxu0 0
  %240 = vmatprep.subr.bf16.mxu0 0
  %241 = vmatpush1.bf16.msra.mxu0 0
  %242 = vmatprep.subr.bf16.mxu0 0
  %243 = vmatpush1.bf16.msra.mxu0 0
  %244 = vmatprep.subr.bf16.mxu0 0
  %245 = vmatpush1.bf16.msra.mxu0 0
  %246 = vmatprep.subr.bf16.mxu0 0
  %247 = vmatpush1.bf16.msra.mxu0 0
  %248 = vmatprep.subr.bf16.mxu0 0
  %249 = vmatpush1.bf16.msra.mxu0 0
  %250 = vmatprep.mubr.bf16.mxu0 0
  %251 = vmatmul.mubr.bf16.gmra.mrb[0].mxu0 %v56
  %v252 = vpop.f32.mrb[0].mxu0
  %v253 = vadd.f32 0.0, %v252
  %v254 = vpop.f32.mrb[0].mxu0
  %v255 = vadd.f32 0.0, %v254
  %v256 = vpop.f32.mrb[0].mxu0
  %v257 = vadd.f32 0.0, %v256
  %v258 = vpop.f32.mrb[0].mxu0
  %v259 = vadd.f32 0.0, %v258
  %260 = vdwg.mxu0
  %261 = vmatprep.subr.bf16.mxu0 %v157
  %262 = vmatpush1.bf16.msra.mxu0 %v156
  %263 = vmatprep.subr.bf16.mxu0 %v161
  %264 = vmatpush1.bf16.msra.mxu0 %v160
  %265 = vmatprep.subr.bf16.mxu0 %v165
  %266 = vmatpush1.bf16.msra.mxu0 %v164
  %267 = vmatprep.subr.bf16.mxu0 %v169
  %268 = vmatpush1.bf16.msra.mxu0 %v168
  %269 = vmatprep.subr.bf16.mxu0 %v173
  %270 = vmatpush1.bf16.msra.mxu0 %v172
  %271 = vmatprep.subr.bf16.mxu0 %v177
  %272 = vmatpush1.bf16.msra.mxu0 %v176
  %273 = vmatprep.subr.bf16.mxu0 %v181
  %274 = vmatpush1.bf16.msra.mxu0 %v180
  %275 = vmatprep.subr.bf16.mxu0 %v185
  %276 = vmatpush1.bf16.msra.mxu0 %v184
  %277 = vmatprep.subr.bf16.mxu0 0
  %278 = vmatpush1.bf16.msra.mxu0 0
  %279 = vmatprep.subr.bf16.mxu0 0
  %280 = vmatpush1.bf16.msra.mxu0 0
  %281 = vmatprep.subr.bf16.mxu0 0
  %282 = vmatpush1.bf16.msra.mxu0 0
  %283 = vmatprep.subr.bf16.mxu0 0
  %284 = vmatpush1.bf16.msra.mxu0 0
  %285 = vmatprep.subr.bf16.mxu0 0
  %286 = vmatpush1.bf16.msra.mxu0 0
  %287 = vmatprep.subr.bf16.mxu0 0
  %288 = vmatpush1.bf16.msra.mxu0 0
  %289 = vmatprep.subr.bf16.mxu0 0
  %290 = vmatpush1.bf16.msra.mxu0 0
  %291 = vmatprep.subr.bf16.mxu0 0
  %292 = vmatpush1.bf16.msra.mxu0 0
  %293 = vmatprep.mubr.bf16.mxu0 0
  %294 = vmatmul.mubr.bf16.gmra.mrb[0].mxu0 %v56
  %v295 = vpop.f32.mrb[0].mxu0
  %v296 = vadd.f32 0.0, %v295
  %v297 = vpop.f32.mrb[0].mxu0
  %v298 = vadd.f32 0.0, %v297
  %v299 = vpop.f32.mrb[0].mxu0
  %v300 = vadd.f32 0.0, %v299
  %v301 = vpop.f32.mrb[0].mxu0
  %v302 = vadd.f32 0.0, %v301
  %303 = vdwg.mxu0
  %v304 = vadd.f32 %v253, %v255
  %v305 = vadd.f32 %v304, %v296
  %v306 = vadd.f32 %v305, %v298
  %307 = vadd.xlane.f32.xlu0 %v306
  %v308 = vpop.xlane.xlu0 %307
  %v309 = vadd.f32 %v257, %v259
  %v310 = vadd.f32 %v309, %v300
  %v311 = vadd.f32 %v310, %v302
  %312 = vadd.xlane.f32.xlu0 %v311
  %v313 = vpop.xlane.xlu0 %312
  %v314 = vrcp.pop 512.0
  %v315 = vmul.f32 %v308, %v314
  %v316 = vmul.f32 %v313, %v314
  %v317 = vmul.f32 %v253, %v253
  %v318 = vmul.f32 %v255, %v255
  %v319 = vmul.f32 %v296, %v296
  %v320 = vmul.f32 %v298, %v298
  %v321 = vmul.f32 %v257, %v257
  %v322 = vmul.f32 %v259, %v259
  %v323 = vmul.f32 %v300, %v300
  %v324 = vmul.f32 %v302, %v302
  %v325 = vadd.f32 %v317, %v318
  %v326 = vadd.f32 %v325, %v319
  %v327 = vadd.f32 %v326, %v320
  %328 = vadd.xlane.f32.xlu0 %v327
  %v329 = vpop.xlane.xlu0 %328
  %v330 = vadd.f32 %v321, %v322
  %v331 = vadd.f32 %v330, %v323
  %v332 = vadd.f32 %v331, %v324
  %333 = vadd.xlane.f32.xlu0 %v332
  %v334 = vpop.xlane.xlu0 %333
  %v335 = vmul.f32 %v329, %v314
  %v336 = vmul.f32 %v334, %v314
  %v337 = vmul.f32 %v315, %v315
  %v338 = vmul.f32 %v316, %v316
  %v339 = vsub.f32 %v335, %v337
  %v340 = vsub.f32 %v336, %v338
  %v341 = vmax.f32 %v339, 0.0
  %v342 = vmax.f32 %v340, 0.0
  %v343 = vsub.f32 %v253, %v315
  %v344 = vsub.f32 %v255, %v315
  %v345 = vsub.f32 %v296, %v315
  %v346 = vsub.f32 %v298, %v315
  %v347 = vsub.f32 %v257, %v316
  %v348 = vsub.f32 %v259, %v316
  %v349 = vsub.f32 %v300, %v316
  %v350 = vsub.f32 %v302, %v316
  %v351 = vadd.f32 %v341, 1e-05
  %v352 = vadd.f32 %v342, 1e-05
  %v353 = vrsqrt.pop %v351
  %v354 = vrsqrt.pop %v352
  %v355 = vmul.f32 %v343, %v353
  %v356 = vmul.f32 %v344, %v353
  %v357 = vmul.f32 %v345, %v353
  %v358 = vmul.f32 %v346, %v353
  %v359 = vmul.f32 %v347, %v354
  %v360 = vmul.f32 %v348, %v354
  %v361 = vmul.f32 %v349, %v354
  %v362 = vmul.f32 %v350, %v354
  %v363 = vld [vmem:[%s2] sm:$0xff]
  %v364 = vld [vmem:[%s2 + $0x8] sm:$0xff]
  %366 = vset.pattern.permute.xlu0 0
  %367 = vperm.xlu0 %366, %v363
  %v368 = vpop.permute.xlu0 %367
  %371 = vset.pattern.permute.xlu0 0
  %372 = vperm.xlu0 %371, %v364
  %v373 = vpop.permute.xlu0 %372
  %v375 = vmul.f32 %v355, %v368
  %v376 = vmul.f32 %v356, %v368
  %v377 = vmul.f32 %v357, %v368
  %v378 = vmul.f32 %v358, %v368
  %v379 = vmul.f32 %v359, %v373
  %v380 = vmul.f32 %v360, %v373
  %v381 = vmul.f32 %v361, %v373
  %v382 = vmul.f32 %v362, %v373
  %v383 = vld [vmem:[%s3] sm:$0xff]
  %v384 = vld [vmem:[%s3 + $0x8] sm:$0xff]
  %386 = vset.pattern.permute.xlu0 0
  %387 = vperm.xlu0 %386, %v383
  %v388 = vpop.permute.xlu0 %387
  %391 = vset.pattern.permute.xlu0 0
  %392 = vperm.xlu0 %391, %v384
  %v393 = vpop.permute.xlu0 %392
  %v395 = vadd.f32 %v375, %v388
  %v396 = vadd.f32 %v376, %v388
  %v397 = vadd.f32 %v377, %v388
  %v398 = vadd.f32 %v378, %v388
  %v399 = vadd.f32 %v379, %v393
  %v400 = vadd.f32 %v380, %v393
  %v401 = vadd.f32 %v381, %v393
  %v402 = vadd.f32 %v382, %v393
  %vm403 = vcmp.gt.f32.partialorder %v395, 0.0
  %vm404 = vcmp.gt.f32.partialorder %v396, 0.0
  %vm405 = vcmp.gt.f32.partialorder %v397, 0.0
  %vm406 = vcmp.gt.f32.partialorder %v398, 0.0
  %vm407 = vcmp.gt.f32.partialorder %v399, 0.0
  %vm408 = vcmp.gt.f32.partialorder %v400, 0.0
  %vm409 = vcmp.gt.f32.partialorder %v401, 0.0
  %vm410 = vcmp.gt.f32.partialorder %v402, 0.0
  %v411 = vmul.f32 %v395, 0.2
  %v412 = vmul.f32 %v396, 0.2
  %v413 = vmul.f32 %v397, 0.2
  %v414 = vmul.f32 %v398, 0.2
  %v415 = vmul.f32 %v399, 0.2
  %v416 = vmul.f32 %v400, 0.2
  %v417 = vmul.f32 %v401, 0.2
  %v418 = vmul.f32 %v402, 0.2
  %v419 = vsel %vm403, %v395, %v411
  %v420 = vsel %vm404, %v396, %v412
  %v421 = vsel %vm405, %v397, %v413
  %v422 = vsel %vm406, %v398, %v414
  %v423 = vsel %vm407, %v399, %v415
  %v424 = vsel %vm408, %v400, %v416
  %v425 = vsel %vm409, %v401, %v417
  %v426 = vsel %vm410, %v402, %v418
  %v427 = vpack.c.bf16 %v423, %v419
  %v428 = vpack.c.bf16 %v424, %v420
  %v429 = vpack.c.bf16 %v425, %v421
  %v430 = vpack.c.bf16 %v426, %v422
  %v435 = vunpack.c.l.b16 %v427
  %v436 = vunpack.c.l.b16 %v428
  %v437 = vunpack.c.l.b16 %v429
  %v438 = vunpack.c.l.b16 %v430
  %v439 = vunpack.c.h.b16 %v427
  %v440 = vunpack.c.h.b16 %v428
  %v441 = vunpack.c.h.b16 %v429
  %v442 = vunpack.c.h.b16 %v430
  %v443 = vpack.c.b16 %v436, %v435
  %v444 = vpack.c.b16 %v438, %v437
  %v445 = vpack.c.b16 %v440, %v439
  %v446 = vpack.c.b16 %v442, %v441
  %451 = vst [vmem:[%s4] sm:$0xff] %v443
  %452 = vst [vmem:[%s4 + $0x8] sm:$0xff] %v444
  %453 = vst [vmem:[%s4 + $0x10] sm:$0xff] %v445
  %454 = vst [vmem:[%s4 + $0x18] sm:$0xff] %v446
  // Predicated region
  $region18: #{netd_forward.5} parent=0 // pred_check
    _
  $region19: #{netd_forward.5} parent=0 // pred_check_branch
    %456 = sbr.rel (0) target = $region21
  $region20: #{netd_forward.5} parent=0 // pred_region
    _
  $region21: #{netd_forward.5} parent=0 // pred_fallthru
    _
  // Predicated region
  $region22: #{netd_forward.5} parent=0 // pred_check
    _
  $region23: #{netd_forward.5} parent=0 // pred_check_branch
    %458 = sbr.rel (0) target = $region25
  $region24: #{netd_forward.5} parent=0 // pred_region
    _
  $region25: #{netd_forward.5} parent=0 // pred_fallthru
    _

// kernel: netd_forward.6
$region0: #{netd_forward.6}
  #allocation0 [shape = 'u32[]', space=smem, size = 0x4, offset = 0x4, fixed_abs, tag = 'smem constant byte address 0x4 - core index']
  #allocation1 [shape = 'u32[144,128]{1,0:T(1,128)}', space=vmem, size = 0x12000, scoped, tag = 'internal scratch']
  %s0 = inlined_call_operand.vmem [shape: bf16[32,256], index: 0, kind: input, shape index: {}]
  %s1 = inlined_call_operand.vmem [shape: bf16[256,128], index: 1, kind: input, shape index: {}]
  %s2 = inlined_call_operand.vmem [shape: f32[32,1], index: 2, kind: input, shape index: {}]
  %s3 = inlined_call_operand.vmem [shape: f32[32,1], index: 3, kind: input, shape index: {}]
  %s4 = inlined_call_operand.vmem [shape: bf16[32,128], index: 4, kind: output, shape index: {}]
  %s5 = sld [smem:[#allocation0]]
  $region26: #{netd_forward.6} parent=0
    _
  %s7 = ssub.s32 1, %s5
  %s8 = scalar_select 0, %s7, %s5
  // Predicated region
  $region2: #{netd_forward.6} parent=0 // pred_check
    _
  $region3: #{netd_forward.6} parent=0 // pred_check_branch
    %10 = sbr.rel (0) target = $region5
  $region4: #{netd_forward.6} parent=0 // pred_region
    _
  $region5: #{netd_forward.6} parent=0 // pred_fallthru
    _
  // Predicated region
  $region6: #{netd_forward.6} parent=0 // pred_check
    _
  $region7: #{netd_forward.6} parent=0 // pred_check_branch
    %12 = sbr.rel (0) target = $region9
  $region8: #{netd_forward.6} parent=0 // pred_region
    _
  $region9: #{netd_forward.6} parent=0 // pred_fallthru
    _
  // Predicated region
  $region10: #{netd_forward.6} parent=0 // pred_check
    _
  $region11: #{netd_forward.6} parent=0 // pred_check_branch
    %14 = sbr.rel (0) target = $region13
  $region12: #{netd_forward.6} parent=0 // pred_region
    _
  $region13: #{netd_forward.6} parent=0 // pred_fallthru
    _
  // Predicated region
  $region14: #{netd_forward.6} parent=0 // pred_check
    _
  $region15: #{netd_forward.6} parent=0 // pred_check_branch
    %16 = sbr.rel (0) target = $region17
  $region16: #{netd_forward.6} parent=0 // pred_region
    _
  $region17: #{netd_forward.6} parent=0 // pred_fallthru
    _
  %v18 = vld [vmem:[%s0] sm:$0xff]
  %v19 = vld [vmem:[%s0 + $0x8] sm:$0xff]
  %v20 = vld [vmem:[%s0 + $0x10] sm:$0xff]
  %v21 = vld [vmem:[%s0 + $0x18] sm:$0xff]
  %v22 = vld [vmem:[%s1] sm:$0xf]
  %v23 = vld [vmem:[%s1 + $0x4] sm:$0xf]
  %v24 = vld [vmem:[%s1 + $0x8] sm:$0xf]
  %v25 = vld [vmem:[%s1 + $0xc] sm:$0xf]
  %v26 = vld [vmem:[%s1 + $0x10] sm:$0xf]
  %v27 = vld [vmem:[%s1 + $0x14] sm:$0xf]
  %v28 = vld [vmem:[%s1 + $0x18] sm:$0xf]
  %v29 = vld [vmem:[%s1 + $0x1c] sm:$0xf]
  %v30 = vld [vmem:[%s1 + $0x20] sm:$0xf]
  %v31 = vld [vmem:[%s1 + $0x24] sm:$0xf]
  %v32 = vld [vmem:[%s1 + $0x28] sm:$0xf]
  %v33 = vld [vmem:[%s1 + $0x2c] sm:$0xf]
  %v34 = vld [vmem:[%s1 + $0x30] sm:$0xf]
  %v35 = vld [vmem:[%s1 + $0x34] sm:$0xf]
  %v36 = vld [vmem:[%s1 + $0x38] sm:$0xf]
  %v37 = vld [vmem:[%s1 + $0x3c] sm:$0xf]
  %v38 = vld [vmem:[%s1 + $0x40] sm:$0xf]
  %v39 = vld [vmem:[%s1 + $0x44] sm:$0xf]
  %v40 = vld [vmem:[%s1 + $0x48] sm:$0xf]
  %v41 = vld [vmem:[%s1 + $0x4c] sm:$0xf]
  %v42 = vld [vmem:[%s1 + $0x50] sm:$0xf]
  %v43 = vld [vmem:[%s1 + $0x54] sm:$0xf]
  %v44 = vld [vmem:[%s1 + $0x58] sm:$0xf]
  %v45 = vld [vmem:[%s1 + $0x5c] sm:$0xf]
  %v46 = vld [vmem:[%s1 + $0x60] sm:$0xf]
  %v47 = vld [vmem:[%s1 + $0x64] sm:$0xf]
  %v48 = vld [vmem:[%s1 + $0x68] sm:$0xf]
  %v49 = vld [vmem:[%s1 + $0x6c] sm:$0xf]
  %v50 = vld [vmem:[%s1 + $0x70] sm:$0xf]
  %v51 = vld [vmem:[%s1 + $0x74] sm:$0xf]
  %v52 = vld [vmem:[%s1 + $0x78] sm:$0xf]
  %v53 = vld [vmem:[%s1 + $0x7c] sm:$0xf]
  %v58 = vunpack.c.l.b16 %v18
  %v59 = vunpack.c.h.b16 %v18
  %v60 = vunpack.c.l.b16 %v19
  %v61 = vunpack.c.h.b16 %v19
  %v62 = vunpack.c.l.b16 %v20
  %v63 = vunpack.c.h.b16 %v20
  %v64 = vunpack.c.l.b16 %v21
  %v65 = vunpack.c.h.b16 %v21
  %v66 = vpack.c.b16 %v60, %v58
  %v67 = vpack.c.b16 %v61, %v59
  %v68 = vpack.c.b16 %v64, %v62
  %v69 = vpack.c.b16 %v65, %v63
  %v106 = vunpack.c.l.b16 %v22
  %v107 = vunpack.c.l.b16 %v23
  %v108 = vunpack.c.l.b16 %v24
  %v109 = vunpack.c.l.b16 %v25
  %v110 = vunpack.c.l.b16 %v26
  %v111 = vunpack.c.l.b16 %v27
  %v112 = vunpack.c.l.b16 %v28
  %v113 = vunpack.c.l.b16 %v29
  %v114 = vunpack.c.l.b16 %v30
  %v115 = vunpack.c.l.b16 %v31
  %v116 = vunpack.c.l.b16 %v32
  %v117 = vunpack.c.l.b16 %v33
  %v118 = vunpack.c.l.b16 %v34
  %v119 = vunpack.c.l.b16 %v35
  %v120 = vunpack.c.l.b16 %v36
  %v121 = vunpack.c.l.b16 %v37
  %v122 = vunpack.c.l.b16 %v38
  %v123 = vunpack.c.l.b16 %v39
  %v124 = vunpack.c.l.b16 %v40
  %v125 = vunpack.c.l.b16 %v41
  %v126 = vunpack.c.l.b16 %v42
  %v127 = vunpack.c.l.b16 %v43
  %v128 = vunpack.c.l.b16 %v44
  %v129 = vunpack.c.l.b16 %v45
  %v130 = vunpack.c.l.b16 %v46
  %v131 = vunpack.c.l.b16 %v47
  %v132 = vunpack.c.l.b16 %v48
  %v133 = vunpack.c.l.b16 %v49
  %v134 = vunpack.c.l.b16 %v50
  %v135 = vunpack.c.l.b16 %v51
  %v136 = vunpack.c.l.b16 %v52
  %v137 = vunpack.c.l.b16 %v53
  %v138 = vpack.c.b16 %v107, %v106
  %v139 = vpack.c.b16 %v109, %v108
  %v140 = vpack.c.b16 %v111, %v110
  %v141 = vpack.c.b16 %v113, %v112
  %v142 = vpack.c.b16 %v115, %v114
  %v143 = vpack.c.b16 %v117, %v116
  %v144 = vpack.c.b16 %v119, %v118
  %v145 = vpack.c.b16 %v121, %v120
  %v146 = vpack.c.b16 %v123, %v122
  %v147 = vpack.c.b16 %v125, %v124
  %v148 = vpack.c.b16 %v127, %v126
  %v149 = vpack.c.b16 %v129, %v128
  %v150 = vpack.c.b16 %v131, %v130
  %v151 = vpack.c.b16 %v133, %v132
  %v152 = vpack.c.b16 %v135, %v134
  %v153 = vpack.c.b16 %v137, %v136
  %170 = vmatprep.subr.bf16.mxu0 0
  %171 = vmatpush1.bf16.msra.mxu0 %v138
  %172 = vmatprep.subr.bf16.mxu0 0
  %173 = vmatpush1.bf16.msra.mxu0 %v139
  %174 = vmatprep.subr.bf16.mxu0 0
  %175 = vmatpush1.bf16.msra.mxu0 %v140
  %176 = vmatprep.subr.bf16.mxu0 0
  %177 = vmatpush1.bf16.msra.mxu0 %v141
  %178 = vmatprep.subr.bf16.mxu0 0
  %179 = vmatpush1.bf16.msra.mxu0 %v142
  %180 = vmatprep.subr.bf16.mxu0 0
  %181 = vmatpush1.bf16.msra.mxu0 %v143
  %182 = vmatprep.subr.bf16.mxu0 0
  %183 = vmatpush1.bf16.msra.mxu0 %v144
  %184 = vmatprep.subr.bf16.mxu0 0
  %185 = vmatpush1.bf16.msra.mxu0 %v145
  %186 = vmatprep.subr.bf16.mxu0 0
  %187 = vmatpush1.bf16.msra.mxu0 %v146
  %188 = vmatprep.subr.bf16.mxu0 0
  %189 = vmatpush1.bf16.msra.mxu0 %v147
  %190 = vmatprep.subr.bf16.mxu0 0
  %191 = vmatpush1.bf16.msra.mxu0 %v148
  %192 = vmatprep.subr.bf16.mxu0 0
  %193 = vmatpush1.bf16.msra.mxu0 %v149
  %194 = vmatprep.subr.bf16.mxu0 0
  %195 = vmatpush1.bf16.msra.mxu0 %v150
  %196 = vmatprep.subr.bf16.mxu0 0
  %197 = vmatpush1.bf16.msra.mxu0 %v151
  %198 = vmatprep.subr.bf16.mxu0 0
  %199 = vmatpush1.bf16.msra.mxu0 %v152
  %200 = vmatprep.subr.bf16.mxu0 0
  %201 = vmatpush1.bf16.msra.mxu0 %v153
  %202 = vmatprep.mubr.bf16.mxu0 %v67
  %203 = vmatmul.mubr.bf16.gmra.mrb[0].mxu0 %v66
  %v204 = vpop.f32.mrb[0].mxu0
  %v205 = vadd.f32 0.0, %v204
  %v206 = vpop.f32.mrb[0].mxu0
  %v207 = vpop.f32.mrb[0].mxu0
  %v208 = vadd.f32 0.0, %v207
  %v209 = vpop.f32.mrb[0].mxu0
  %210 = vmatprep.mubr.bf16.mxu0 %v69
  %211 = vmatmul.mubr.bf16.gmra.mrb[0].mxu0 %v68
  %v212 = vpop.f32.mrb[0].mxu0
  %v213 = vadd.f32 0.0, %v212
  %v214 = vpop.f32.mrb[0].mxu0
  %v215 = vpop.f32.mrb[0].mxu0
  %v216 = vadd.f32 0.0, %v215
  %v217 = vpop.f32.mrb[0].mxu0
  %218 = vdwg.mxu0
  %219 = vadd.xlane.f32.xlu0 %v205
  %v220 = vpop.xlane.xlu0 %219
  %221 = vadd.xlane.f32.xlu0 %v208
  %v222 = vpop.xlane.xlu0 %221
  %223 = vadd.xlane.f32.xlu0 %v213
  %v224 = vpop.xlane.xlu0 %223
  %225 = vadd.xlane.f32.xlu0 %v216
  %v226 = vpop.xlane.xlu0 %225
  %v227 = vrcp.pop 128.0
  %v228 = vmul.f32 %v220, %v227
  %v229 = vmul.f32 %v222, %v227
  %v230 = vmul.f32 %v224, %v227
  %v231 = vmul.f32 %v226, %v227
  %v232 = vmul.f32 %v205, %v205
  %v233 = vmul.f32 %v208, %v208
  %v234 = vmul.f32 %v213, %v213
  %v235 = vmul.f32 %v216, %v216
  %236 = vadd.xlane.f32.xlu0 %v232
  %v237 = vpop.xlane.xlu0 %236
  %238 = vadd.xlane.f32.xlu0 %v233
  %v239 = vpop.xlane.xlu0 %238
  %240 = vadd.xlane.f32.xlu0 %v234
  %v241 = vpop.xlane.xlu0 %240
  %242 = vadd.xlane.f32.xlu0 %v235
  %v243 = vpop.xlane.xlu0 %242
  %v244 = vmul.f32 %v237, %v227
  %v245 = vmul.f32 %v239, %v227
  %v246 = vmul.f32 %v241, %v227
  %v247 = vmul.f32 %v243, %v227
  %v248 = vmul.f32 %v228, %v228
  %v249 = vmul.f32 %v229, %v229
  %v250 = vmul.f32 %v230, %v230
  %v251 = vmul.f32 %v231, %v231
  %v252 = vsub.f32 %v244, %v248
  %v253 = vsub.f32 %v245, %v249
  %v254 = vsub.f32 %v246, %v250
  %v255 = vsub.f32 %v247, %v251
  %v256 = vmax.f32 %v252, 0.0
  %v257 = vmax.f32 %v253, 0.0
  %v258 = vmax.f32 %v254, 0.0
  %v259 = vmax.f32 %v255, 0.0
  %v260 = vsub.f32 %v205, %v228
  %v261 = vsub.f32 %v208, %v229
  %v262 = vsub.f32 %v213, %v230
  %v263 = vsub.f32 %v216, %v231
  %v264 = vadd.f32 %v256, 1e-05
  %v265 = vadd.f32 %v257, 1e-05
  %v266 = vadd.f32 %v258, 1e-05
  %v267 = vadd.f32 %v259, 1e-05
  %v268 = vrsqrt.pop %v264
  %v269 = vrsqrt.pop %v265
  %v270 = vrsqrt.pop %v266
  %v271 = vrsqrt.pop %v267
  %v272 = vmul.f32 %v260, %v268
  %v273 = vmul.f32 %v261, %v269
  %v274 = vmul.f32 %v262, %v270
  %v275 = vmul.f32 %v263, %v271
  %v276 = vld [vmem:[%s2] sm:$0xff]
  %v277 = vld [vmem:[%s2 + $0x8] sm:$0xff]
  %v278 = vld [vmem:[%s2 + $0x10] sm:$0xff]
  %v279 = vld [vmem:[%s2 + $0x18] sm:$0xff]
  %281 = vset.pattern.permute.xlu0 0
  %282 = vperm.xlu0 %281, %v276
  %v283 = vpop.permute.xlu0 %282
  %286 = vset.pattern.permute.xlu0 0
  %287 = vperm.xlu0 %286, %v277
  %v288 = vpop.permute.xlu0 %287
  %291 = vset.pattern.permute.xlu0 0
  %292 = vperm.xlu0 %291, %v278
  %v293 = vpop.permute.xlu0 %292
  %296 = vset.pattern.permute.xlu0 0
  %297 = vperm.xlu0 %296, %v279
  %v298 = vpop.permute.xlu0 %297
  %v300 = vmul.f32 %v272, %v283
  %v301 = vmul.f32 %v273, %v288
  %v302 = vmul.f32 %v274, %v293
  %v303 = vmul.f32 %v275, %v298
  %v304 = vld [vmem:[%s3] sm:$0xff]
  %v305 = vld [vmem:[%s3 + $0x8] sm:$0xff]
  %v306 = vld [vmem:[%s3 + $0x10] sm:$0xff]
  %v307 = vld [vmem:[%s3 + $0x18] sm:$0xff]
  %309 = vset.pattern.permute.xlu0 0
  %310 = vperm.xlu0 %309, %v304
  %v311 = vpop.permute.xlu0 %310
  %314 = vset.pattern.permute.xlu0 0
  %315 = vperm.xlu0 %314, %v305
  %v316 = vpop.permute.xlu0 %315
  %319 = vset.pattern.permute.xlu0 0
  %320 = vperm.xlu0 %319, %v306
  %v321 = vpop.permute.xlu0 %320
  %324 = vset.pattern.permute.xlu0 0
  %325 = vperm.xlu0 %324, %v307
  %v326 = vpop.permute.xlu0 %325
  %v328 = vadd.f32 %v300, %v311
  %v329 = vadd.f32 %v301, %v316
  %v330 = vadd.f32 %v302, %v321
  %v331 = vadd.f32 %v303, %v326
  %vm332 = vcmp.gt.f32.partialorder %v328, 0.0
  %vm333 = vcmp.gt.f32.partialorder %v329, 0.0
  %vm334 = vcmp.gt.f32.partialorder %v330, 0.0
  %vm335 = vcmp.gt.f32.partialorder %v331, 0.0
  %v336 = vmul.f32 %v328, 0.2
  %v337 = vmul.f32 %v329, 0.2
  %v338 = vmul.f32 %v330, 0.2
  %v339 = vmul.f32 %v331, 0.2
  %v340 = vsel %vm332, %v328, %v336
  %v341 = vsel %vm333, %v329, %v337
  %v342 = vsel %vm334, %v330, %v338
  %v343 = vsel %vm335, %v331, %v339
  %v344 = vpack.c.bf16 %v341, %v340
  %v345 = vpack.c.bf16 %v343, %v342
  %v348 = vunpack.c.l.b16 %v344
  %v349 = vunpack.c.h.b16 %v344
  %v350 = vunpack.c.l.b16 %v345
  %v351 = vunpack.c.h.b16 %v345
  %v352 = vpack.c.b16 %v348, %v348
  %v353 = vpack.c.b16 %v349, %v349
  %v354 = vpack.c.b16 %v350, %v350
  %v355 = vpack.c.b16 %v351, %v351
  %360 = vst [vmem:[%s4] sm:$0xf] %v352
  %361 = vst [vmem:[%s4 + $0x4] sm:$0xf] %v353
  %362 = vst [vmem:[%s4 + $0x8] sm:$0xf] %v354
  %363 = vst [vmem:[%s4 + $0xc] sm:$0xf] %v355
  // Predicated region
  $region18: #{netd_forward.6} parent=0 // pred_check
    _
  $region19: #{netd_forward.6} parent=0 // pred_check_branch
    %365 = sbr.rel (0) target = $region21
  $region20: #{netd_forward.6} parent=0 // pred_region
    _
  $region21: #{netd_forward.6} parent=0 // pred_fallthru
    _
  // Predicated region
  $region22: #{netd_forward.6} parent=0 // pred_check
    _
  $region23: #{netd_forward.6} parent=0 // pred_check_branch
    %367 = sbr.rel (0) target = $region25
  $region24: #{netd_forward.6} parent=0 // pred_region
    _
  $region25: #{netd_forward.6} parent=0 // pred_fallthru
    _

// kernel: netd_forward.7
$region0: #{netd_forward.7}
  #allocation0 [shape = 'u32[]', space=smem, size = 0x4, offset = 0x4, fixed_abs, tag = 'smem constant byte address 0x4 - core index']
  #allocation1 [shape = 'u32[144,128]{1,0:T(1,128)}', space=vmem, size = 0x12000, scoped, tag = 'internal scratch']
  #allocation2 [shape = 'f32[1,1]{1,0:T(1,128)S(1)}', space=vmem, size = 0x200, scoped, tag = 'scoped memory for netd_forward.7']
  %s0 = inlined_call_operand.vmem [shape: bf16[64,512], index: 0, kind: input, shape index: {}]
  %s1 = inlined_call_operand.vmem [shape: bf16[512,32], index: 1, kind: input, shape index: {}]
  %s2 = inlined_call_operand.vmem [shape: f32[64,1], index: 2, kind: input, shape index: {}]
  %s3 = inlined_call_operand.vmem [shape: f32[64,1], index: 3, kind: input, shape index: {}]
  %s4 = inlined_call_operand.vmem [shape: f32[64,32], index: 4, kind: input, shape index: {}]
  %s5 = inlined_call_operand.vmem [shape: f32[32,2], index: 5, kind: input, shape index: {}]
  %s6 = inlined_call_operand.<no memory space> [shape: f32[1,1], index: 6, kind: input, shape index: {}]
  %s7 = inlined_call_operand.hbm [shape: f32[1,2], index: 7, kind: output, shape index: {}]
  %s8 = sld [smem:[#allocation0]]
  $region38: #{netd_forward.7} parent=0
    _
  %s10 = ssub.s32 1, %s8
  %s11 = scalar_select 0, %s10, %s8
  %v12 = vstv %s6
  %13 = vst [vmem:[#allocation2] sm:$0x1] %v12
  $region1: #{netd_forward.7} parent=0
    #allocation3 [shape = 'u8[512]{0}', space=vmem, size = 0x400, scoped, tag = 'output window, operand 0, single buffered']
    #allocation4 [shape = 's32[1]{0}', space=sflag, size = 0x4, scoped, tag = 'scoped memory for netd_forward.7']
    %14 = vsyncpa [#allocation4], 0
    // Predicated region
    $region2: #{netd_forward.7} parent=1 // pred_check
      _
    $region3: #{netd_forward.7} parent=1 // pred_check_branch
      %16 = sbr.rel (0) target = $region5
    $region4: #{netd_forward.7} parent=1 // pred_region
      _
    $region5: #{netd_forward.7} parent=1 // pred_fallthru
      _
    // Predicated region
    $region6: #{netd_forward.7} parent=1 // pred_check
      _
    $region7: #{netd_forward.7} parent=1 // pred_check_branch
      %18 = sbr.rel (0) target = $region9
    $region8: #{netd_forward.7} parent=1 // pred_region
      _
    $region9: #{netd_forward.7} parent=1 // pred_fallthru
      _
    // Predicated region
    $region10: #{netd_forward.7} parent=1 // pred_check
      _
    $region11: #{netd_forward.7} parent=1 // pred_check_branch
      %20 = sbr.rel (0) target = $region13
    $region12: #{netd_forward.7} parent=1 // pred_region
      _
    $region13: #{netd_forward.7} parent=1 // pred_fallthru
      _
    // Predicated region
    $region14: #{netd_forward.7} parent=1 // pred_check
      _
    $region15: #{netd_forward.7} parent=1 // pred_check_branch
      %22 = sbr.rel (0) target = $region17
    $region16: #{netd_forward.7} parent=1 // pred_region
      _
    $region17: #{netd_forward.7} parent=1 // pred_fallthru
      _
    // Predicated region
    $region18: #{netd_forward.7} parent=1 // pred_check
      _
    $region19: #{netd_forward.7} parent=1 // pred_check_branch
      %24 = sbr.rel (0) target = $region21
    $region20: #{netd_forward.7} parent=1 // pred_region
      _
    $region21: #{netd_forward.7} parent=1 // pred_fallthru
      _
    // Predicated region
    $region22: #{netd_forward.7} parent=1 // pred_check
      _
    $region23: #{netd_forward.7} parent=1 // pred_check_branch
      %26 = sbr.rel (0) target = $region25
    $region24: #{netd_forward.7} parent=1 // pred_region
      _
    $region25: #{netd_forward.7} parent=1 // pred_fallthru
      _
    // Predicated region
    $region26: #{netd_forward.7} parent=1 // pred_check
      _
    $region27: #{netd_forward.7} parent=1 // pred_check_branch
      %28 = sbr.rel (0) target = $region29
    $region28: #{netd_forward.7} parent=1 // pred_region
      _
    $region29: #{netd_forward.7} parent=1 // pred_fallthru
      _
    %v30 = vld [vmem:[%s0] sm:$0xff]
    %v31 = vld [vmem:[%s0 + $0x8] sm:$0xff]
    %v32 = vld [vmem:[%s0 + $0x10] sm:$0xff]
    %v33 = vld [vmem:[%s0 + $0x18] sm:$0xff]
    %v34 = vld [vmem:[%s0 + $0x20] sm:$0xff]
    %v35 = vld [vmem:[%s0 + $0x28] sm:$0xff]
    %v36 = vld [vmem:[%s0 + $0x30] sm:$0xff]
    %v37 = vld [vmem:[%s0 + $0x38] sm:$0xff]
    %v38 = vld [vmem:[%s0 + $0x40] sm:$0xff]
    %v39 = vld [vmem:[%s0 + $0x48] sm:$0xff]
    %v40 = vld [vmem:[%s0 + $0x50] sm:$0xff]
    %v41 = vld [vmem:[%s0 + $0x58] sm:$0xff]
    %v42 = vld [vmem:[%s0 + $0x60] sm:$0xff]
    %v43 = vld [vmem:[%s0 + $0x68] sm:$0xff]
    %v44 = vld [vmem:[%s0 + $0x70] sm:$0xff]
    %v45 = vld [vmem:[%s0 + $0x78] sm:$0xff]
    %v46 = vld [vmem:[%s1] sm:$0xf]
    %v47 = vld [vmem:[%s1 + $0x4] sm:$0xf]
    %v48 = vld [vmem:[%s1 + $0x8] sm:$0xf]
    %v49 = vld [vmem:[%s1 + $0xc] sm:$0xf]
    %v50 = vld [vmem:[%s1 + $0x10] sm:$0xf]
    %v51 = vld [vmem:[%s1 + $0x14] sm:$0xf]
    %v52 = vld [vmem:[%s1 + $0x18] sm:$0xf]
    %v53 = vld [vmem:[%s1 + $0x1c] sm:$0xf]
    %v54 = vld [vmem:[%s1 + $0x20] sm:$0xf]
    %v55 = vld [vmem:[%s1 + $0x24] sm:$0xf]
    %v56 = vld [vmem:[%s1 + $0x28] sm:$0xf]
    %v57 = vld [vmem:[%s1 + $0x2c] sm:$0xf]
    %v58 = vld [vmem:[%s1 + $0x30] sm:$0xf]
    %v59 = vld [vmem:[%s1 + $0x34] sm:$0xf]
    %v60 = vld [vmem:[%s1 + $0x38] sm:$0xf]
    %v61 = vld [vmem:[%s1 + $0x3c] sm:$0xf]
    %v62 = vld [vmem:[%s1 + $0x40] sm:$0xf]
    %v63 = vld [vmem:[%s1 + $0x44] sm:$0xf]
    %v64 = vld [vmem:[%s1 + $0x48] sm:$0xf]
    %v65 = vld [vmem:[%s1 + $0x4c] sm:$0xf]
    %v66 = vld [vmem:[%s1 + $0x50] sm:$0xf]
    %v67 = vld [vmem:[%s1 + $0x54] sm:$0xf]
    %v68 = vld [vmem:[%s1 + $0x58] sm:$0xf]
    %v69 = vld [vmem:[%s1 + $0x5c] sm:$0xf]
    %v70 = vld [vmem:[%s1 + $0x60] sm:$0xf]
    %v71 = vld [vmem:[%s1 + $0x64] sm:$0xf]
    %v72 = vld [vmem:[%s1 + $0x68] sm:$0xf]
    %v73 = vld [vmem:[%s1 + $0x6c] sm:$0xf]
    %v74 = vld [vmem:[%s1 + $0x70] sm:$0xf]
    %v75 = vld [vmem:[%s1 + $0x74] sm:$0xf]
    %v76 = vld [vmem:[%s1 + $0x78] sm:$0xf]
    %v77 = vld [vmem:[%s1 + $0x7c] sm:$0xf]
    %v78 = vld [vmem:[%s1 + $0x80] sm:$0xf]
    %v79 = vld [vmem:[%s1 + $0x84] sm:$0xf]
    %v80 = vld [vmem:[%s1 + $0x88] sm:$0xf]
    %v81 = vld [vmem:[%s1 + $0x8c] sm:$0xf]
    %v82 = vld [vmem:[%s1 + $0x90] sm:$0xf]
    %v83 = vld [vmem:[%s1 + $0x94] sm:$0xf]
    %v84 = vld [vmem:[%s1 + $0x98] sm:$0xf]
    %v85 = vld [vmem:[%s1 + $0x9c] sm:$0xf]
    %v86 = vld [vmem:[%s1 + $0xa0] sm:$0xf]
    %v87 = vld [vmem:[%s1 + $0xa4] sm:$0xf]
    %v88 = vld [vmem:[%s1 + $0xa8] sm:$0xf]
    %v89 = vld [vmem:[%s1 + $0xac] sm:$0xf]
    %v90 = vld [vmem:[%s1 + $0xb0] sm:$0xf]
    %v91 = vld [vmem:[%s1 + $0xb4] sm:$0xf]
    %v92 = vld [vmem:[%s1 + $0xb8] sm:$0xf]
    %v93 = vld [vmem:[%s1 + $0xbc] sm:$0xf]
    %v94 = vld [vmem:[%s1 + $0xc0] sm:$0xf]
    %v95 = vld [vmem:[%s1 + $0xc4] sm:$0xf]
    %v96 = vld [vmem:[%s1 + $0xc8] sm:$0xf]
    %v97 = vld [vmem:[%s1 + $0xcc] sm:$0xf]
    %v98 = vld [vmem:[%s1 + $0xd0] sm:$0xf]
    %v99 = vld [vmem:[%s1 + $0xd4] sm:$0xf]
    %v100 = vld [vmem:[%s1 + $0xd8] sm:$0xf]
    %v101 = vld [vmem:[%s1 + $0xdc] sm:$0xf]
    %v102 = vld [vmem:[%s1 + $0xe0] sm:$0xf]
    %v103 = vld [vmem:[%s1 + $0xe4] sm:$0xf]
    %v104 = vld [vmem:[%s1 + $0xe8] sm:$0xf]
    %v105 = vld [vmem:[%s1 + $0xec] sm:$0xf]
    %v106 = vld [vmem:[%s1 + $0xf0] sm:$0xf]
    %v107 = vld [vmem:[%s1 + $0xf4] sm:$0xf]
    %v108 = vld [vmem:[%s1 + $0xf8] sm:$0xf]
    %v109 = vld [vmem:[%s1 + $0xfc] sm:$0xf]
    %v126 = vunpack.c.l.b16 %v30
    %v127 = vunpack.c.h.b16 %v30
    %v128 = vunpack.c.l.b16 %v31
    %v129 = vunpack.c.h.b16 %v31
    %v130 = vunpack.c.l.b16 %v32
    %v131 = vunpack.c.h.b16 %v32
    %v132 = vunpack.c.l.b16 %v33
    %v133 = vunpack.c.h.b16 %v33
    %v134 = vunpack.c.l.b16 %v34
    %v135 = vunpack.c.h.b16 %v34
    %v136 = vunpack.c.l.b16 %v35
    %v137 = vunpack.c.h.b16 %v35
    %v138 = vunpack.c.l.b16 %v36
    %v139 = vunpack.c.h.b16 %v36
    %v140 = vunpack.c.l.b16 %v37
    %v141 = vunpack.c.h.b16 %v37
    %v142 = vunpack.c.l.b16 %v38
    %v143 = vunpack.c.h.b16 %v38
    %v144 = vunpack.c.l.b16 %v39
    %v145 = vunpack.c.h.b16 %v39
    %v146 = vunpack.c.l.b16 %v40
    %v147 = vunpack.c.h.b16 %v40
    %v148 = vunpack.c.l.b16 %v41
    %v149 = vunpack.c.h.b16 %v41
    %v150 = vunpack.c.l.b16 %v42
    %v151 = vunpack.c.h.b16 %v42
    %v152 = vunpack.c.l.b16 %v43
    %v153 = vunpack.c.h.b16 %v43
    %v154 = vunpack.c.l.b16 %v44
    %v155 = vunpack.c.h.b16 %v44
    %v156 = vunpack.c.l.b16 %v45
    %v157 = vunpack.c.h.b16 %v45
    %v158 = vpack.c.b16 %v130, %v126
    %v159 = vpack.c.b16 %v131, %v127
    %v160 = vpack.c.b16 %v132, %v128
    %v161 = vpack.c.b16 %v133, %v129
    %v162 = vpack.c.b16 %v138, %v134
    %v163 = vpack.c.b16 %v139, %v135
    %v164 = vpack.c.b16 %v140, %v136
    %v165 = vpack.c.b16 %v141, %v137
    %v166 = vpack.c.b16 %v146, %v142
    %v167 = vpack.c.b16 %v147, %v143
    %v168 = vpack.c.b16 %v148, %v144
    %v169 = vpack.c.b16 %v149, %v145
    %v170 = vpack.c.b16 %v154, %v150
    %v171 = vpack.c.b16 %v155, %v151
    %v172 = vpack.c.b16 %v156, %v152
    %v173 = vpack.c.b16 %v157, %v153
    %v254 = vunpack.c.l.b16 %v46
    %v255 = vunpack.c.l.b16 %v47
    %v256 = vunpack.c.l.b16 %v48
    %v257 = vunpack.c.l.b16 %v49
    %v258 = vunpack.c.l.b16 %v50
    %v259 = vunpack.c.l.b16 %v51
    %v260 = vunpack.c.l.b16 %v52
    %v261 = vunpack.c.l.b16 %v53
    %v262 = vunpack.c.l.b16 %v54
    %v263 = vunpack.c.l.b16 %v55
    %v264 = vunpack.c.l.b16 %v56
    %v265 = vunpack.c.l.b16 %v57
    %v266 = vunpack.c.l.b16 %v58
    %v267 = vunpack.c.l.b16 %v59
    %v268 = vunpack.c.l.b16 %v60
    %v269 = vunpack.c.l.b16 %v61
    %v270 = vunpack.c.l.b16 %v62
    %v271 = vunpack.c.l.b16 %v63
    %v272 = vunpack.c.l.b16 %v64
    %v273 = vunpack.c.l.b16 %v65
    %v274 = vunpack.c.l.b16 %v66
    %v275 = vunpack.c.l.b16 %v67
    %v276 = vunpack.c.l.b16 %v68
    %v277 = vunpack.c.l.b16 %v69
    %v278 = vunpack.c.l.b16 %v70
    %v279 = vunpack.c.l.b16 %v71
    %v280 = vunpack.c.l.b16 %v72
    %v281 = vunpack.c.l.b16 %v73
    %v282 = vunpack.c.l.b16 %v74
    %v283 = vunpack.c.l.b16 %v75
    %v284 = vunpack.c.l.b16 %v76
    %v285 = vunpack.c.l.b16 %v77
    %v286 = vunpack.c.l.b16 %v78
    %v287 = vunpack.c.l.b16 %v79
    %v288 = vunpack.c.l.b16 %v80
    %v289 = vunpack.c.l.b16 %v81
    %v290 = vunpack.c.l.b16 %v82
    %v291 = vunpack.c.l.b16 %v83
    %v292 = vunpack.c.l.b16 %v84
    %v293 = vunpack.c.l.b16 %v85
    %v294 = vunpack.c.l.b16 %v86
    %v295 = vunpack.c.l.b16 %v87
    %v296 = vunpack.c.l.b16 %v88
    %v297 = vunpack.c.l.b16 %v89
    %v298 = vunpack.c.l.b16 %v90
    %v299 = vunpack.c.l.b16 %v91
    %v300 = vunpack.c.l.b16 %v92
    %v301 = vunpack.c.l.b16 %v93
    %v302 = vunpack.c.l.b16 %v94
    %v303 = vunpack.c.l.b16 %v95
    %v304 = vunpack.c.l.b16 %v96
    %v305 = vunpack.c.l.b16 %v97
    %v306 = vunpack.c.l.b16 %v98
    %v307 = vunpack.c.l.b16 %v99
    %v308 = vunpack.c.l.b16 %v100
    %v309 = vunpack.c.l.b16 %v101
    %v310 = vunpack.c.l.b16 %v102
    %v311 = vunpack.c.l.b16 %v103
    %v312 = vunpack.c.l.b16 %v104
    %v313 = vunpack.c.l.b16 %v105
    %v314 = vunpack.c.l.b16 %v106
    %v315 = vunpack.c.l.b16 %v107
    %v316 = vunpack.c.l.b16 %v108
    %v317 = vunpack.c.l.b16 %v109
    %v318 = vpack.c.b16 %v255, %v254
    %v319 = vpack.c.b16 %v257, %v256
    %v320 = vpack.c.b16 %v259, %v258
    %v321 = vpack.c.b16 %v261, %v260
    %v322 = vpack.c.b16 %v263, %v262
    %v323 = vpack.c.b16 %v265, %v264
    %v324 = vpack.c.b16 %v267, %v266
    %v325 = vpack.c.b16 %v269, %v268
    %v326 = vpack.c.b16 %v271, %v270
    %v327 = vpack.c.b16 %v273, %v272
    %v328 = vpack.c.b16 %v275, %v274
    %v329 = vpack.c.b16 %v277, %v276
    %v330 = vpack.c.b16 %v279, %v278
    %v331 = vpack.c.b16 %v281, %v280
    %v332 = vpack.c.b16 %v283, %v282
    %v333 = vpack.c.b16 %v285, %v284
    %v334 = vpack.c.b16 %v287, %v286
    %v335 = vpack.c.b16 %v289, %v288
    %v336 = vpack.c.b16 %v291, %v290
    %v337 = vpack.c.b16 %v293, %v292
    %v338 = vpack.c.b16 %v295, %v294
    %v339 = vpack.c.b16 %v297, %v296
    %v340 = vpack.c.b16 %v299, %v298
    %v341 = vpack.c.b16 %v301, %v300
    %v342 = vpack.c.b16 %v303, %v302
    %v343 = vpack.c.b16 %v305, %v304
    %v344 = vpack.c.b16 %v307, %v306
    %v345 = vpack.c.b16 %v309, %v308
    %v346 = vpack.c.b16 %v311, %v310
    %v347 = vpack.c.b16 %v313, %v312
    %v348 = vpack.c.b16 %v315, %v314
    %v349 = vpack.c.b16 %v317, %v316
    %382 = vmatprep.subr.bf16.mxu0 0
    %383 = vmatpush1.bf16.msra.mxu0 %v318
    %384 = vmatprep.subr.bf16.mxu0 0
    %385 = vmatpush1.bf16.msra.mxu0 %v319
    %386 = vmatprep.subr.bf16.mxu0 0
    %387 = vmatpush1.bf16.msra.mxu0 %v320
    %388 = vmatprep.subr.bf16.mxu0 0
    %389 = vmatpush1.bf16.msra.mxu0 %v321
    %390 = vmatprep.subr.bf16.mxu0 0
    %391 = vmatpush1.bf16.msra.mxu0 %v322
    %392 = vmatprep.subr.bf16.mxu0 0
    %393 = vmatpush1.bf16.msra.mxu0 %v323
    %394 = vmatprep.subr.bf16.mxu0 0
    %395 = vmatpush1.bf16.msra.mxu0 %v324
    %396 = vmatprep.subr.bf16.mxu0 0
    %397 = vmatpush1.bf16.msra.mxu0 %v325
    %398 = vmatprep.subr.bf16.mxu0 0
    %399 = vmatpush1.bf16.msra.mxu0 %v326
    %400 = vmatprep.subr.bf16.mxu0 0
    %401 = vmatpush1.bf16.msra.mxu0 %v327
    %402 = vmatprep.subr.bf16.mxu0 0
    %403 = vmatpush1.bf16.msra.mxu0 %v328
    %404 = vmatprep.subr.bf16.mxu0 0
    %405 = vmatpush1.bf16.msra.mxu0 %v329
    %406 = vmatprep.subr.bf16.mxu0 0
    %407 = vmatpush1.bf16.msra.mxu0 %v330
    %408 = vmatprep.subr.bf16.mxu0 0
    %409 = vmatpush1.bf16.msra.mxu0 %v331
    %410 = vmatprep.subr.bf16.mxu0 0
    %411 = vmatpush1.bf16.msra.mxu0 %v332
    %412 = vmatprep.subr.bf16.mxu0 0
    %413 = vmatpush1.bf16.msra.mxu0 %v333
    %414 = vmatprep.mubr.bf16.mxu0 %v159
    %415 = vmatmul.mubr.bf16.gmra.mrb[0].mxu0 %v158
    %v416 = vpop.f32.mrb[0].mxu0
    %v417 = vadd.f32 0.0, %v416
    %v418 = vpop.f32.mrb[0].mxu0
    %v419 = vpop.f32.mrb[0].mxu0
    %v420 = vadd.f32 0.0, %v419
    %v421 = vpop.f32.mrb[0].mxu0
    %422 = vmatprep.mubr.bf16.mxu0 %v163
    %423 = vmatmul.mubr.bf16.gmra.mrb[0].mxu0 %v162
    %v424 = vpop.f32.mrb[0].mxu0
    %v425 = vadd.f32 0.0, %v424
    %v426 = vpop.f32.mrb[0].mxu0
    %v427 = vpop.f32.mrb[0].mxu0
    %v428 = vadd.f32 0.0, %v427
    %v429 = vpop.f32.mrb[0].mxu0
    %430 = vmatprep.mubr.bf16.mxu0 %v167
    %431 = vmatmul.mubr.bf16.gmra.mrb[0].mxu0 %v166
    %v432 = vpop.f32.mrb[0].mxu0
    %v433 = vadd.f32 0.0, %v432
    %v434 = vpop.f32.mrb[0].mxu0
    %v435 = vpop.f32.mrb[0].mxu0
    %v436 = vadd.f32 0.0, %v435
    %v437 = vpop.f32.mrb[0].mxu0
    %438 = vmatprep.mubr.bf16.mxu0 %v171
    %439 = vmatmul.mubr.bf16.gmra.mrb[0].mxu0 %v170
    %v440 = vpop.f32.mrb[0].mxu0
    %v441 = vadd.f32 0.0, %v440
    %v442 = vpop.f32.mrb[0].mxu0
    %v443 = vpop.f32.mrb[0].mxu0
    %v444 = vadd.f32 0.0, %v443
    %v445 = vpop.f32.mrb[0].mxu0
    %446 = vdwg.mxu0
    %447 = vmatprep.subr.bf16.mxu0 0
    %448 = vmatpush1.bf16.msra.mxu0 %v334
    %449 = vmatprep.subr.bf16.mxu0 0
    %450 = vmatpush1.bf16.msra.mxu0 %v335
    %451 = vmatprep.subr.bf16.mxu0 0
    %452 = vmatpush1.bf16.msra.mxu0 %v336
    %453 = vmatprep.subr.bf16.mxu0 0
    %454 = vmatpush1.bf16.msra.mxu0 %v337
    %455 = vmatprep.subr.bf16.mxu0 0
    %456 = vmatpush1.bf16.msra.mxu0 %v338
    %457 = vmatprep.subr.bf16.mxu0 0
    %458 = vmatpush1.bf16.msra.mxu0 %v339
    %459 = vmatprep.subr.bf16.mxu0 0
    %460 = vmatpush1.bf16.msra.mxu0 %v340
    %461 = vmatprep.subr.bf16.mxu0 0
    %462 = vmatpush1.bf16.msra.mxu0 %v341
    %463 = vmatprep.subr.bf16.mxu0 0
    %464 = vmatpush1.bf16.msra.mxu0 %v342
    %465 = vmatprep.subr.bf16.mxu0 0
    %466 = vmatpush1.bf16.msra.mxu0 %v343
    %467 = vmatprep.subr.bf16.mxu0 0
    %468 = vmatpush1.bf16.msra.mxu0 %v344
    %469 = vmatprep.subr.bf16.mxu0 0
    %470 = vmatpush1.bf16.msra.mxu0 %v345
    %471 = vmatprep.subr.bf16.mxu0 0
    %472 = vmatpush1.bf16.msra.mxu0 %v346
    %473 = vmatprep.subr.bf16.mxu0 0
    %474 = vmatpush1.bf16.msra.mxu0 %v347
    %475 = vmatprep.subr.bf16.mxu0 0
    %476 = vmatpush1.bf16.msra.mxu0 %v348
    %477 = vmatprep.subr.bf16.mxu0 0
    %478 = vmatpush1.bf16.msra.mxu0 %v349
    %479 = vmatprep.mubr.bf16.mxu0 %v161
    %480 = vmatmul.mubr.bf16.gmra.mrb[0].mxu0 %v160
    %v481 = vpop.f32.mrb[0].mxu0
    %v482 = vadd.f32 %v417, %v481
    %v483 = vpop.f32.mrb[0].mxu0
    %v484 = vpop.f32.mrb[0].mxu0
    %v485 = vadd.f32 %v420, %v484
    %v486 = vpop.f32.mrb[0].mxu0
    %487 = vmatprep.mubr.bf16.mxu0 %v165
    %488 = vmatmul.mubr.bf16.gmra.mrb[0].mxu0 %v164
    %v489 = vpop.f32.mrb[0].mxu0
    %v490 = vadd.f32 %v425, %v489
    %v491 = vpop.f32.mrb[0].mxu0
    %v492 = vpop.f32.mrb[0].mxu0
    %v493 = vadd.f32 %v428, %v492
    %v494 = vpop.f32.mrb[0].mxu0
    %495 = vmatprep.mubr.bf16.mxu0 %v169
    %496 = vmatmul.mubr.bf16.gmra.mrb[0].mxu0 %v168
    %v497 = vpop.f32.mrb[0].mxu0
    %v498 = vadd.f32 %v433, %v497
    %v499 = vpop.f32.mrb[0].mxu0
    %v500 = vpop.f32.mrb[0].mxu0
    %v501 = vadd.f32 %v436, %v500
    %v502 = vpop.f32.mrb[0].mxu0
    %503 = vmatprep.mubr.bf16.mxu0 %v173
    %504 = vmatmul.mubr.bf16.gmra.mrb[0].mxu0 %v172
    %v505 = vpop.f32.mrb[0].mxu0
    %v506 = vadd.f32 %v441, %v505
    %v507 = vpop.f32.mrb[0].mxu0
    %v508 = vpop.f32.mrb[0].mxu0
    %v509 = vadd.f32 %v444, %v508
    %v510 = vpop.f32.mrb[0].mxu0
    %511 = vdwg.mxu0
    %vm512 = vcmask 261120
    %v513 = vsel %vm512, %v482, 0.0
    %514 = vadd.xlane.f32.xlu0 %v513
    %v515 = vpop.xlane.xlu0 %514
    %v516 = vsel %vm512, %v485, 0.0
    %517 = vadd.xlane.f32.xlu0 %v516
    %v518 = vpop.xlane.xlu0 %517
    %v519 = vsel %vm512, %v490, 0.0
    %520 = vadd.xlane.f32.xlu0 %v519
    %v521 = vpop.xlane.xlu0 %520
    %v522 = vsel %vm512, %v493, 0.0
    %523 = vadd.xlane.f32.xlu0 %v522
    %v524 = vpop.xlane.xlu0 %523
    %v525 = vsel %vm512, %v498, 0.0
    %526 = vadd.xlane.f32.xlu0 %v525
    %v527 = vpop.xlane.xlu0 %526
    %v528 = vsel %vm512, %v501, 0.0
    %529 = vadd.xlane.f32.xlu0 %v528
    %v530 = vpop.xlane.xlu0 %529
    %v531 = vsel %vm512, %v506, 0.0
    %532 = vadd.xlane.f32.xlu0 %v531
    %v533 = vpop.xlane.xlu0 %532
    %v534 = vsel %vm512, %v509, 0.0
    %535 = vadd.xlane.f32.xlu0 %v534
    %v536 = vpop.xlane.xlu0 %535
    %v537 = vrcp.pop 32.0
    %v538 = vmul.f32 %v515, %v537
    %v539 = vmul.f32 %v518, %v537
    %v540 = vmul.f32 %v521, %v537
    %v541 = vmul.f32 %v524, %v537
    %v542 = vmul.f32 %v527, %v537
    %v543 = vmul.f32 %v530, %v537
    %v544 = vmul.f32 %v533, %v537
    %v545 = vmul.f32 %v536, %v537
    %v546 = vmul.f32 %v482, %v482
    %v547 = vmul.f32 %v485, %v485
    %v548 = vmul.f32 %v490, %v490
    %v549 = vmul.f32 %v493, %v493
    %v550 = vmul.f32 %v498, %v498
    %v551 = vmul.f32 %v501, %v501
    %v552 = vmul.f32 %v506, %v506
    %v553 = vmul.f32 %v509, %v509
    %v554 = vsel %vm512, %v546, 0.0
    %555 = vadd.xlane.f32.xlu0 %v554
    %v556 = vpop.xlane.xlu0 %555
    %v557 = vsel %vm512, %v547, 0.0
    %558 = vadd.xlane.f32.xlu0 %v557
    %v559 = vpop.xlane.xlu0 %558
    %v560 = vsel %vm512, %v548, 0.0
    %561 = vadd.xlane.f32.xlu0 %v560
    %v562 = vpop.xlane.xlu0 %561
    %v563 = vsel %vm512, %v549, 0.0
    %564 = vadd.xlane.f32.xlu0 %v563
    %v565 = vpop.xlane.xlu0 %564
    %v566 = vsel %vm512, %v550, 0.0
    %567 = vadd.xlane.f32.xlu0 %v566
    %v568 = vpop.xlane.xlu0 %567
    %v569 = vsel %vm512, %v551, 0.0
    %570 = vadd.xlane.f32.xlu0 %v569
    %v571 = vpop.xlane.xlu0 %570
    %v572 = vsel %vm512, %v552, 0.0
    %573 = vadd.xlane.f32.xlu0 %v572
    %v574 = vpop.xlane.xlu0 %573
    %v575 = vsel %vm512, %v553, 0.0
    %576 = vadd.xlane.f32.xlu0 %v575
    %v577 = vpop.xlane.xlu0 %576
    %v578 = vmul.f32 %v556, %v537
    %v579 = vmul.f32 %v559, %v537
    %v580 = vmul.f32 %v562, %v537
    %v581 = vmul.f32 %v565, %v537
    %v582 = vmul.f32 %v568, %v537
    %v583 = vmul.f32 %v571, %v537
    %v584 = vmul.f32 %v574, %v537
    %v585 = vmul.f32 %v577, %v537
    %v586 = vmul.f32 %v538, %v538
    %v587 = vmul.f32 %v539, %v539
    %v588 = vmul.f32 %v540, %v540
    %v589 = vmul.f32 %v541, %v541
    %v590 = vmul.f32 %v542, %v542
    %v591 = vmul.f32 %v543, %v543
    %v592 = vmul.f32 %v544, %v544
    %v593 = vmul.f32 %v545, %v545
    %v594 = vsub.f32 %v578, %v586
    %v595 = vsub.f32 %v579, %v587
    %v596 = vsub.f32 %v580, %v588
    %v597 = vsub.f32 %v581, %v589
    %v598 = vsub.f32 %v582, %v590
    %v599 = vsub.f32 %v583, %v591
    %v600 = vsub.f32 %v584, %v592
    %v601 = vsub.f32 %v585, %v593
    %v602 = vmax.f32 %v594, 0.0
    %v603 = vmax.f32 %v595, 0.0
    %v604 = vmax.f32 %v596, 0.0
    %v605 = vmax.f32 %v597, 0.0
    %v606 = vmax.f32 %v598, 0.0
    %v607 = vmax.f32 %v599, 0.0
    %v608 = vmax.f32 %v600, 0.0
    %v609 = vmax.f32 %v601, 0.0
    %v610 = vsub.f32 %v482, %v538
    %v611 = vsub.f32 %v485, %v539
    %v612 = vsub.f32 %v490, %v540
    %v613 = vsub.f32 %v493, %v541
    %v614 = vsub.f32 %v498, %v542
    %v615 = vsub.f32 %v501, %v543
    %v616 = vsub.f32 %v506, %v544
    %v617 = vsub.f32 %v509, %v545
    %v618 = vadd.f32 %v602, 1e-05
    %v619 = vadd.f32 %v603, 1e-05
    %v620 = vadd.f32 %v604, 1e-05
    %v621 = vadd.f32 %v605, 1e-05
    %v622 = vadd.f32 %v606, 1e-05
    %v623 = vadd.f32 %v607, 1e-05
    %v624 = vadd.f32 %v608, 1e-05
    %v625 = vadd.f32 %v609, 1e-05
    %v626 = vrsqrt.pop %v618
    %v627 = vrsqrt.pop %v619
    %v628 = vrsqrt.pop %v620
    %v629 = vrsqrt.pop %v621
    %v630 = vrsqrt.pop %v622
    %v631 = vrsqrt.pop %v623
    %v632 = vrsqrt.pop %v624
    %v633 = vrsqrt.pop %v625
    %v634 = vmul.f32 %v610, %v626
    %v635 = vmul.f32 %v611, %v627
    %v636 = vmul.f32 %v612, %v628
    %v637 = vmul.f32 %v613, %v629
    %v638 = vmul.f32 %v614, %v630
    %v639 = vmul.f32 %v615, %v631
    %v640 = vmul.f32 %v616, %v632
    %v641 = vmul.f32 %v617, %v633
    %v642 = vld [vmem:[%s2] sm:$0xff]
    %v643 = vld [vmem:[%s2 + $0x8] sm:$0xff]
    %v644 = vld [vmem:[%s2 + $0x10] sm:$0xff]
    %v645 = vld [vmem:[%s2 + $0x18] sm:$0xff]
    %v646 = vld [vmem:[%s2 + $0x20] sm:$0xff]
    %v647 = vld [vmem:[%s2 + $0x28] sm:$0xff]
    %v648 = vld [vmem:[%s2 + $0x30] sm:$0xff]
    %v649 = vld [vmem:[%s2 + $0x38] sm:$0xff]
    %651 = vset.pattern.permute.xlu0 0
    %652 = vperm.xlu0 %651, %v642
    %v653 = vpop.permute.xlu0 %652
    %656 = vset.pattern.permute.xlu0 0
    %657 = vperm.xlu0 %656, %v643
    %v658 = vpop.permute.xlu0 %657
    %661 = vset.pattern.permute.xlu0 0
    %662 = vperm.xlu0 %661, %v644
    %v663 = vpop.permute.xlu0 %662
    %666 = vset.pattern.permute.xlu0 0
    %667 = vperm.xlu0 %666, %v645
    %v668 = vpop.permute.xlu0 %667
    %671 = vset.pattern.permute.xlu0 0
    %672 = vperm.xlu0 %671, %v646
    %v673 = vpop.permute.xlu0 %672
    %676 = vset.pattern.permute.xlu0 0
    %677 = vperm.xlu0 %676, %v647
    %v678 = vpop.permute.xlu0 %677
    %681 = vset.pattern.permute.xlu0 0
    %682 = vperm.xlu0 %681, %v648
    %v683 = vpop.permute.xlu0 %682
    %686 = vset.pattern.permute.xlu0 0
    %687 = vperm.xlu0 %686, %v649
    %v688 = vpop.permute.xlu0 %687
    %v690 = vmul.f32 %v634, %v653
    %v691 = vmul.f32 %v635, %v658
    %v692 = vmul.f32 %v636, %v663
    %v693 = vmul.f32 %v637, %v668
    %v694 = vmul.f32 %v638, %v673
    %v695 = vmul.f32 %v639, %v678
    %v696 = vmul.f32 %v640, %v683
    %v697 = vmul.f32 %v641, %v688
    %v698 = vld [vmem:[%s3] sm:$0xff]
    %v699 = vld [vmem:[%s3 + $0x8] sm:$0xff]
    %v700 = vld [vmem:[%s3 + $0x10] sm:$0xff]
    %v701 = vld [vmem:[%s3 + $0x18] sm:$0xff]
    %v702 = vld [vmem:[%s3 + $0x20] sm:$0xff]
    %v703 = vld [vmem:[%s3 + $0x28] sm:$0xff]
    %v704 = vld [vmem:[%s3 + $0x30] sm:$0xff]
    %v705 = vld [vmem:[%s3 + $0x38] sm:$0xff]
    %707 = vset.pattern.permute.xlu0 0
    %708 = vperm.xlu0 %707, %v698
    %v709 = vpop.permute.xlu0 %708
    %712 = vset.pattern.permute.xlu0 0
    %713 = vperm.xlu0 %712, %v699
    %v714 = vpop.permute.xlu0 %713
    %717 = vset.pattern.permute.xlu0 0
    %718 = vperm.xlu0 %717, %v700
    %v719 = vpop.permute.xlu0 %718
    %722 = vset.pattern.permute.xlu0 0
    %723 = vperm.xlu0 %722, %v701
    %v724 = vpop.permute.xlu0 %723
    %727 = vset.pattern.permute.xlu0 0
    %728 = vperm.xlu0 %727, %v702
    %v729 = vpop.permute.xlu0 %728
    %732 = vset.pattern.permute.xlu0 0
    %733 = vperm.xlu0 %732, %v703
    %v734 = vpop.permute.xlu0 %733
    %737 = vset.pattern.permute.xlu0 0
    %738 = vperm.xlu0 %737, %v704
    %v739 = vpop.permute.xlu0 %738
    %742 = vset.pattern.permute.xlu0 0
    %743 = vperm.xlu0 %742, %v705
    %v744 = vpop.permute.xlu0 %743
    %v746 = vadd.f32 %v690, %v709
    %v747 = vadd.f32 %v691, %v714
    %v748 = vadd.f32 %v692, %v719
    %v749 = vadd.f32 %v693, %v724
    %v750 = vadd.f32 %v694, %v729
    %v751 = vadd.f32 %v695, %v734
    %v752 = vadd.f32 %v696, %v739
    %v753 = vadd.f32 %v697, %v744
    %vm754 = vcmp.gt.f32.partialorder %v746, 0.0
    %vm755 = vcmp.gt.f32.partialorder %v747, 0.0
    %vm756 = vcmp.gt.f32.partialorder %v748, 0.0
    %vm757 = vcmp.gt.f32.partialorder %v749, 0.0
    %vm758 = vcmp.gt.f32.partialorder %v750, 0.0
    %vm759 = vcmp.gt.f32.partialorder %v751, 0.0
    %vm760 = vcmp.gt.f32.partialorder %v752, 0.0
    %vm761 = vcmp.gt.f32.partialorder %v753, 0.0
    %v762 = vmul.f32 %v746, 0.2
    %v763 = vmul.f32 %v747, 0.2
    %v764 = vmul.f32 %v748, 0.2
    %v765 = vmul.f32 %v749, 0.2
    %v766 = vmul.f32 %v750, 0.2
    %v767 = vmul.f32 %v751, 0.2
    %v768 = vmul.f32 %v752, 0.2
    %v769 = vmul.f32 %v753, 0.2
    %v770 = vsel %vm754, %v746, %v762
    %v771 = vsel %vm755, %v747, %v763
    %v772 = vsel %vm756, %v748, %v764
    %v773 = vsel %vm757, %v749, %v765
    %v774 = vsel %vm758, %v750, %v766
    %v775 = vsel %vm759, %v751, %v767
    %v776 = vsel %vm760, %v752, %v768
    %v777 = vsel %vm761, %v753, %v769
    %v778 = vld [vmem:[%s4] sm:$0xff]
    %v779 = vld [vmem:[%s4 + $0x8] sm:$0xff]
    %v780 = vld [vmem:[%s4 + $0x10] sm:$0xff]
    %v781 = vld [vmem:[%s4 + $0x18] sm:$0xff]
    %v782 = vld [vmem:[%s4 + $0x20] sm:$0xff]
    %v783 = vld [vmem:[%s4 + $0x28] sm:$0xff]
    %v784 = vld [vmem:[%s4 + $0x30] sm:$0xff]
    %v785 = vld [vmem:[%s4 + $0x38] sm:$0xff]
    %v786 = vmul.f32 %v770, %v778
    %v787 = vmul.f32 %v771, %v779
    %v788 = vmul.f32 %v772, %v780
    %v789 = vmul.f32 %v773, %v781
    %v790 = vmul.f32 %v774, %v782
    %v791 = vmul.f32 %v775, %v783
    %v792 = vmul.f32 %v776, %v784
    %v793 = vmul.f32 %v777, %v785
    %v794 = vld [vmem:[%s5] sm:$0xff]
    %v795 = vld [vmem:[%s5 + $0x8] sm:$0xff]
    %v796 = vld [vmem:[%s5 + $0x10] sm:$0xff]
    %v797 = vld [vmem:[%s5 + $0x18] sm:$0xff]
    %v799 = vsel %vm512, %v786, 0
    %v802 = vsel %vm512, %v787, 0
    %v805 = vsel %vm512, %v788, 0
    %v808 = vsel %vm512, %v789, 0
    %v811 = vsel %vm512, %v790, 0
    %v814 = vsel %vm512, %v791, 0
    %v817 = vsel %vm512, %v792, 0
    %v820 = vsel %vm512, %v793, 0
    %822 = vmatprep.subr.mxu0 0.0
    %823 = vmatpush1.msra.mxu0 %v794
    %824 = vmatprep.subr.mxu0 0.0
    %825 = vmatpush1.msra.mxu0 %v795
    %826 = vmatprep.subr.mxu0 0.0
    %827 = vmatpush1.msra.mxu0 %v796
    %828 = vmatprep.subr.mxu0 0.0
    %829 = vmatpush1.msra.mxu0 %v797
    %830 = vmatprep.subr.mxu0 0.0
    %831 = vmatpush1.msra.mxu0 0.0
    %832 = vmatprep.subr.mxu0 0.0
    %833 = vmatpush1.msra.mxu0 0.0
    %834 = vmatprep.subr.mxu0 0.0
    %835 = vmatpush1.msra.mxu0 0.0
    %836 = vmatprep.subr.mxu0 0.0
    %837 = vmatpush1.msra.mxu0 0.0
    %838 = vmatprep.subr.mxu0 0.0
    %839 = vmatpush1.msra.mxu0 0.0
    %840 = vmatprep.subr.mxu0 0.0
    %841 = vmatpush1.msra.mxu0 0.0
    %842 = vmatprep.subr.mxu0 0.0
    %843 = vmatpush1.msra.mxu0 0.0
    %844 = vmatprep.subr.mxu0 0.0
    %845 = vmatpush1.msra.mxu0 0.0
    %846 = vmatprep.subr.mxu0 0.0
    %847 = vmatpush1.msra.mxu0 0.0
    %848 = vmatprep.subr.mxu0 0.0
    %849 = vmatpush1.msra.mxu0 0.0
    %850 = vmatprep.subr.mxu0 0.0
    %851 = vmatpush1.msra.mxu0 0.0
    %852 = vmatprep.subr.mxu0 0.0
    %853 = vmatpush1.msra.mxu0 0.0
    %854 = vmatprep.subr.mxu0 0.0
    %855 = vmatpush1.msra.mxu0 0.0
    %856 = vmatprep.subr.mxu0 0.0
    %857 = vmatpush1.msra.mxu0 0.0
    %858 = vmatprep.subr.mxu0 0.0
    %859 = vmatpush1.msra.mxu0 0.0
    %860 = vmatprep.subr.mxu0 0.0
    %861 = vmatpush1.msra.mxu0 0.0
    %862 = vmatprep.subr.mxu0 0.0
    %863 = vmatpush1.msra.mxu0 0.0
    %864 = vmatprep.subr.mxu0 0.0
    %865 = vmatpush1.msra.mxu0 0.0
    %866 = vmatprep.subr.mxu0 0.0
    %867 = vmatpush1.msra.mxu0 0.0
    %868 = vmatprep.subr.mxu0 0.0
    %869 = vmatpush1.msra.mxu0 0.0
    %870 = vmatprep.subr.mxu0 0.0
    %871 = vmatpush1.msra.mxu0 0.0
    %872 = vmatprep.subr.mxu0 0.0
    %873 = vmatpush1.msra.mxu0 0.0
    %874 = vmatprep.subr.mxu0 0.0
    %875 = vmatpush1.msra.mxu0 0.0
    %876 = vmatprep.subr.mxu0 0.0
    %877 = vmatpush1.msra.mxu0 0.0
    %878 = vmatprep.subr.mxu0 0.0
    %879 = vmatpush1.msra.mxu0 0.0
    %880 = vmatprep.subr.mxu0 0.0
    %881 = vmatpush1.msra.mxu0 0.0
    %882 = vmatprep.subr.mxu0 0.0
    %883 = vmatpush1.msra.mxu0 0.0
    %884 = vmatprep.subr.mxu0 0.0
    %885 = vmatpush1.msra.mxu0 0.0
    %886 = vmatprep.mubr.f32.mxu0 0.0
    %887 = vmatmul.mubr.f32.gmra.mrb[0].mxu0 %v799
    %v888 = vpop.f32.mrb[0].mxu0
    %v889 = vadd.f32 0.0, %v888
    %v890 = vpop.f32.mrb[0].mxu0
    %891 = vmatprep.mubr.f32.mxu0 0.0
    %892 = vmatmul.mubr.f32.gmra.mrb[0].mxu0 %v802
    %v893 = vpop.f32.mrb[0].mxu0
    %v894 = vadd.f32 0.0, %v893
    %v895 = vpop.f32.mrb[0].mxu0
    %896 = vmatprep.mubr.f32.mxu0 0.0
    %897 = vmatmul.mubr.f32.gmra.mrb[0].mxu0 %v805
    %v898 = vpop.f32.mrb[0].mxu0
    %v899 = vadd.f32 0.0, %v898
    %v900 = vpop.f32.mrb[0].mxu0
    %901 = vmatprep.mubr.f32.mxu0 0.0
    %902 = vmatmul.mubr.f32.gmra.mrb[0].mxu0 %v808
    %v903 = vpop.f32.mrb[0].mxu0
    %v904 = vadd.f32 0.0, %v903
    %v905 = vpop.f32.mrb[0].mxu0
    %906 = vmatprep.mubr.f32.mxu0 0.0
    %907 = vmatmul.mubr.f32.gmra.mrb[0].mxu0 %v811
    %v908 = vpop.f32.mrb[0].mxu0
    %v909 = vadd.f32 0.0, %v908
    %v910 = vpop.f32.mrb[0].mxu0
    %911 = vmatprep.mubr.f32.mxu0 0.0
    %912 = vmatmul.mubr.f32.gmra.mrb[0].mxu0 %v814
    %v913 = vpop.f32.mrb[0].mxu0
    %v914 = vadd.f32 0.0, %v913
    %v915 = vpop.f32.mrb[0].mxu0
    %916 = vmatprep.mubr.f32.mxu0 0.0
    %917 = vmatmul.mubr.f32.gmra.mrb[0].mxu0 %v817
    %v918 = vpop.f32.mrb[0].mxu0
    %v919 = vadd.f32 0.0, %v918
    %v920 = vpop.f32.mrb[0].mxu0
    %921 = vmatprep.mubr.f32.mxu0 0.0
    %922 = vmatmul.mubr.f32.gmra.mrb[0].mxu0 %v820
    %v923 = vpop.f32.mrb[0].mxu0
    %v924 = vadd.f32 0.0, %v923
    %v925 = vpop.f32.mrb[0].mxu0
    %926 = vdwg.mxu0
    %vm927 = vcmask 15360
    %v928 = vsel %vm927, %v889, 0.0
    %v929 = vsel %vm927, %v894, 0.0
    %v930 = vadd.f32 %v928, %v929
    %v931 = vsel %vm927, %v899, 0.0
    %v932 = vadd.f32 %v930, %v931
    %v933 = vsel %vm927, %v904, 0.0
    %v934 = vadd.f32 %v932, %v933
    %v935 = vsel %vm927, %v909, 0.0
    %v936 = vadd.f32 %v934, %v935
    %v937 = vsel %vm927, %v914, 0.0
    %v938 = vadd.f32 %v936, %v937
    %v939 = vsel %vm927, %v919, 0.0
    %v940 = vadd.f32 %v938, %v939
    %v941 = vsel %vm927, %v924, 0.0
    %v942 = vadd.f32 %v940, %v941
    %v943 = vrot.slane %v942, 4
    %v944 = vadd.f32 %v942, %v943
    %v945 = vrot.slane %v944, 2
    %v946 = vadd.f32 %v944, %v945
    %v947 = vrot.slane %v946, 1
    %v948 = vadd.f32 %v946, %v947
    %v949 = vld [vmem:[#allocation2] sm:$0x1]
    %951 = vset.pattern.permute.xlu0 0
    %952 = vperm.xlu0 %951, %v949
    %v953 = vpop.permute.xlu0 %952
    %v955 = vlaneseq
    %v956 = vshrl.u32 %v955, 7
    %v957 = vsub.s32 0, %v956
    %v958 = vrot.slane %v953, %v957
    %v959 = vadd.f32 %v948, %v958
    %v960 = vsub.f32 0.0, %v959
    %v961 = vmul.f32 %v960, 1.442695
    %v962 = vpow.pop %v961
    %v963 = vadd.f32 %v962, 1.0
    %v964 = vrcp.pop %v963
    %v965 = vmul.f32 1.0, %v964
    %vm966 = vcmask 8192
    %967 = vst.msk [vmem:[#allocation3] sm:$0x1] %vm966, %v965
    // Predicated region
    $region30: #{netd_forward.7} parent=1 // pred_check
      _
    $region31: #{netd_forward.7} parent=1 // pred_check_branch
      %969 = sbr.rel (0) target = $region33
    $region32: #{netd_forward.7} parent=1 // pred_region
      %s971 = ssub.s32 16, 16
      %972 = vsyncadd [#allocation4], %s971
      %s974 = sshll.u32 [#allocation3], 4
      %s975 = int_to_ptr.vmem [resolvable:$true] %s974
      %977 = dma.vmem_to_hbm [thread:$0]  %s975, 16, %s7, [#allocation4]
    $region33: #{netd_forward.7} parent=1 // pred_fallthru
      _
    // Predicated region
    $region34: #{netd_forward.7} parent=1 // pred_check
      _
    $region35: #{netd_forward.7} parent=1 // pred_check_branch
      %979 = sbr.rel (0) target = $region37
    $region36: #{netd_forward.7} parent=1 // pred_region
      %980 = dma.done [#allocation4], 16
    $region37: #{netd_forward.7} parent=1 // pred_fallthru
      _
    %981 = vsyncpa [#allocation4], 1

</llo_original>
